<compile_context>
chip_gen: v7x
topology: tpu7x:2x2x1
jax: 0.10.0
libtpu: 0.0.40
codegen_flags: <defaults>
</compile_context>

<pallas_src>
import math

import jax
import jax.numpy as jnp
from jax import lax
from jax.experimental import pallas as pl
from jax.experimental.pallas import tpu as pltpu

_LANE = 128
_SUBLANE = 8


def _round_up(x, m):
    return ((x + m - 1) // m) * m


def _device_kind():
    try:
        return jax.devices()[0].device_kind.lower()
    except Exception:  # noqa: BLE001 - best-effort hardware sniffing only
        return ""


def _default_block_batch(kind):
    # v5e: single vector-store slot -> keep the (tb, hp) f32 intermediates small.
    if "v5" in kind:
        return 256
    # v6e / v7x: per-grid-step overhead (~0.35us) dominates tiny tiles -> go big.
    return 1024


def _num_tensorcores(kind):
    # v7x has 2 TensorCores per chip; give the "parallel" batch axis >= 2 steps there.
    return 2 if "v7" in kind else 1


# ---------------------------------------------------------------------------
# Kernel
# ---------------------------------------------------------------------------
def _make_policy_kernel(hp, ap, din_real, noise_std, apply_affine, gen_noise):
    """Fused 3-layer MLP (+ optional in-kernel fake-feature noise).

    hp / ap:     lane-padded hidden / action widths (multiples of 128).
    din_real:    number of real state columns (fake columns live to their right).
    gen_noise:   generate the Gaussian fake features with the hardware PRNG.
    apply_affine: emit the final `* scale + bias` only if it is not identity.
    """

    def kernel(*refs):
        if gen_noise:
            seed_ref, x_ref, w1_ref, w2_ref, wm_ref, b_ref, o_ref = refs
        else:
            x_ref, w1_ref, w2_ref, wm_ref, b_ref, o_ref = refs

        x = x_ref[...]                                   # (TB, Din) bf16
        b = b_ref[...]                                   # (5, Pmax) f32
        b1, b2, bm = b[0:1, :hp], b[1:2, :hp], b[2:3, :ap]

        if gen_noise:
            # Fused utils.add_fake_features: hardware-PRNG Gaussian noise is
            # added into the (zero-initialized) fake columns of x.
            pltpu.prng_seed(seed_ref[0], pl.program_id(0))
            z = pltpu.stateful_normal(x.shape, jnp.float32)
            col = lax.broadcasted_iota(jnp.int32, x.shape, 1)
            x = x + jnp.where(col >= din_real, noise_std * z, 0.0).astype(x.dtype)

        # linear1 + ReLU   (bf16 MXU inputs, f32 accumulation)
        h1 = jnp.dot(x, w1_ref[...], preferred_element_type=jnp.float32)
        h1 = jnp.maximum(h1 + b1, 0.0)                   # (TB, Hp) f32

        # linear2 + ReLU
        h2 = jnp.dot(h1.astype(jnp.bfloat16), w2_ref[...],
                     preferred_element_type=jnp.float32)
        h2 = jnp.maximum(h2 + b2, 0.0)                   # (TB, Hp) f32

        # mean head + tanh (+ optional action-space affine)
        m = jnp.dot(h2.astype(jnp.bfloat16), wm_ref[...],
                    preferred_element_type=jnp.float32)
        m = jnp.tanh(m + bm)                             # (TB, Ap) f32
        if apply_affine:
            m = m * b[3:4, :ap] + b[4:5, :ap]

        o_ref[...] = m.astype(o_ref.dtype)

    return kernel


# ---------------------------------------------------------------------------
# Wrapper
# ---------------------------------------------------------------------------
def _forward_impl(state, packed, num_actions, *, seed, fake_noise_std,
                  num_fake_features, out_dtype, block_batch,
                  fuse_noise, single_buffer_weights):
    w1, w2, wm, b_all = packed["w1"], packed["w2"], packed["wm"], packed["b"]
    apply_affine = bool(packed["apply_affine"])
    din_full, hp = w1.shape
    ap = wm.shape[1]
    pmax = b_all.shape[1]
    nf = int(num_fake_features)
    din_real = din_full - nf
    batch = state.shape[0]

    kind = _device_kind()
    if block_batch is None:
        block_batch = _default_block_batch(kind)

    gen_noise = fuse_noise and nf > 0

    # --- build the (batch, din_full) bf16 state operand ----------------------
    x = state.astype(jnp.bfloat16)
    if nf > 0:
        if gen_noise:
            # Fake columns stay zero; the kernel adds the PRNG noise in place.
            x = jnp.pad(x, ((0, 0), (0, nf)))
        else:
            # Fallback path: XLA-side noise + concat (extra HBM round-trip).
            noise = fake_noise_std * jax.random.normal(
                jax.random.PRNGKey(seed), (batch, nf), jnp.float32)
            x = jnp.concatenate([x, noise.astype(jnp.bfloat16)], axis=1)

    # --- batch tiling: bounded padding, >= 2 grid steps on v7x ---------------
    b8 = _round_up(batch, _SUBLANE)
    min_steps = 2 if (_num_tensorcores(kind) >= 2 and b8 >= 2 * _SUBLANE) else 1
    nsteps = max(pl.cdiv(b8, block_batch), min_steps)
    tb = _round_up(pl.cdiv(b8, nsteps), _SUBLANE)
    nsteps = pl.cdiv(b8, tb)
    bp = nsteps * tb
    if bp != batch:
        x = jnp.pad(x, ((0, bp - batch), (0, 0)))

    # --- VMEM budget + cost estimate ------------------------------------------
    out_isz = jnp.dtype(out_dtype).itemsize
    w_bytes = (w1.size + w2.size + wm.size) * 2 + b_all.size * 4
    io_tile_bytes = tb * din_full * 2 + tb * ap * out_isz
    interm_bytes = 4 * tb * hp * 4                     # h1/h2 f32 + temps
    n_wbuf = 1 if single_buffer_weights else 2
    needed = n_wbuf * w_bytes + 2 * io_tile_bytes + interm_bytes
    vmem_limit = int(min(max(2 * needed, 32 * 1024 * 1024), 64 * 1024 * 1024))

    cost = pl.CostEstimate(
        flops=2 * bp * (din_full * hp + hp * hp + hp * ap),
        transcendentals=bp * ap + (bp * din_full if gen_noise else 0),
        bytes_accessed=bp * din_full * 2 + w_bytes + bp * ap * out_isz)

    # --- specs -----------------------------------------------------------------
    res_kwargs = {"pipeline_mode": pl.Buffered(1)} if single_buffer_weights else {}

    def resident(shape):
        # Same block every grid step -> DMA'd once, stays VMEM-resident.
        return pl.BlockSpec(shape, lambda i: (0, 0), **res_kwargs)

    in_specs, operands = [], []
    if gen_noise:
        in_specs.append(pl.BlockSpec(memory_space=pltpu.MemorySpace.SMEM))
        operands.append(jnp.asarray([seed], dtype=jnp.int32))
    in_specs += [
        pl.BlockSpec((tb, din_full), lambda i: (i, 0)),   # state tile (pipelined)
        resident((din_full, hp)),                         # w1
        resident((hp, hp)),                               # w2
        resident((hp, ap)),                               # wm
        resident((5, pmax)),                              # biases + action affine
    ]
    operands += [x, w1, w2, wm, b_all]

    kernel = _make_policy_kernel(hp, ap, din_real, float(fake_noise_std),
                                 apply_affine, gen_noise)

    out_padded = pl.pallas_call(
        kernel,
        out_shape=jax.ShapeDtypeStruct((bp, ap), out_dtype),
        grid=(nsteps,),
        in_specs=in_specs,
        out_specs=pl.BlockSpec((tb, ap), lambda i: (i, 0)),
        compiler_params=pltpu.CompilerParams(
            dimension_semantics=("parallel",),            # batch across TCs on v7x
            vmem_limit_bytes=vmem_limit),
        cost_estimate=cost,
    )(*operands)

    # TODO(synk): rows [batch:bp] of out_padded hold tanh(bias) garbage — keep
    # slicing them off here if out_padded is ever aliased/consumed directly.
    return out_padded[:batch, :num_actions]


def deterministic_policy_forward(state, packed, num_actions, *, seed=0,
                                 fake_noise_std=0.0, num_fake_features=0,
                                 out_dtype=jnp.float32, block_batch=None):
    """DeterministicPolicy.forward as one fused Pallas kernel (eager entry point).

    Tries the fully optimized configuration first (in-kernel PRNG fake features,
    single-buffered resident weights) and degrades gracefully if the local
    Pallas/Mosaic build rejects either feature, so the call always compiles.
    (The fallback only triggers in eager mode; when jitting, call _forward_impl
    with an explicit configuration.)
    """
    last_err = None
    for fuse_noise, single_buf in ((True, True), (True, False), (False, False)):
        try:
            return _forward_impl(state, packed, num_actions, seed=seed,
                                 fake_noise_std=fake_noise_std,
                                 num_fake_features=num_fake_features,
                                 out_dtype=out_dtype, block_batch=block_batch,
                                 fuse_noise=fuse_noise,
                                 single_buffer_weights=single_buf)
        except Exception as e:  # noqa: BLE001 - deliberate graceful degradation
            last_err = e
    raise last_err


# ---------------------------------------------------------------------------
# Parameter init (Xavier uniform, gain=1; bias = 0) and packing
# ---------------------------------------------------------------------------
def xavier_uniform(key, fan_in, fan_out):
    limit = math.sqrt(6.0 / (fan_in + fan_out))
    # stored as (in, out) — already transposed relative to PyTorch's (out, in)
    return jax.random.uniform(key, (fan_in, fan_out), jnp.float32, -limit, limit)


def init_params(key, dim_state_with_fake, hidden_dim, num_actions):
    k1, k2, k3 = jax.random.split(key, 3)
    return {
        "w1": xavier_uniform(k1, dim_state_with_fake, hidden_dim),
        "b1": jnp.zeros((hidden_dim,), jnp.float32),
        "w2": xavier_uniform(k2, hidden_dim, hidden_dim),
        "b2": jnp.zeros((hidden_dim,), jnp.float32),
        "wm": xavier_uniform(k3, hidden_dim, num_actions),
        "bm": jnp.zeros((num_actions,), jnp.float32),
    }


def pack_params(raw, action_scale=1.0, action_bias=0.0):
    """Pad feature dims to 128 lanes, cast weights to bf16, pack the 3 biases
    plus the action affine (scale, bias) into one (5, Pmax) f32 array."""
    # TODO(synk): optional v7x-only fp8 (e4m3) weight packing with a per-tensor
    # scale folded into the epilogue (needs accuracy validation; not for v5e/v6e).
    din, h = raw["w1"].shape
    a = raw["wm"].shape[1]
    hp = _round_up(h, _LANE)
    ap = _round_up(a, _LANE)
    pmax = max(hp, ap)

    def pad2(w, rows, cols):
        return jnp.pad(w, ((0, rows - w.shape[0]), (0, cols - w.shape[1])))

    def pad1(v, n):
        return jnp.pad(v.astype(jnp.float32), (0, n - v.shape[0]))

    scale_vec = jnp.broadcast_to(jnp.ravel(jnp.asarray(action_scale, jnp.float32)), (a,))
    bias_vec = jnp.broadcast_to(jnp.ravel(jnp.asarray(action_bias, jnp.float32)), (a,))
    is_identity = (jnp.asarray(action_scale).size == 1
                   and jnp.asarray(action_bias).size == 1
                   and float(jnp.ravel(jnp.asarray(action_scale))[0]) == 1.0
                   and float(jnp.ravel(jnp.asarray(action_bias))[0]) == 0.0)

    return {
        "w1": pad2(raw["w1"], din, hp).astype(jnp.bfloat16),
        "w2": pad2(raw["w2"], hp, hp).astype(jnp.bfloat16),
        "wm": pad2(raw["wm"], hp, ap).astype(jnp.bfloat16),
        "b": jnp.stack([pad1(raw["b1"], pmax), pad1(raw["b2"], pmax),
                        pad1(raw["bm"], pmax), pad1(scale_vec, pmax),
                        pad1(bias_vec, pmax)], axis=0),
        "apply_affine": not is_identity,
    }


# ---------------------------------------------------------------------------
# References
# ---------------------------------------------------------------------------
def reference_forward_f32(state_aug, raw, num_actions, action_scale=1.0, action_bias=0.0):
    """Pure-f32 reference matching the PyTorch module's math."""
    h1 = jnp.maximum(state_aug @ raw["w1"] + raw["b1"], 0.0)
    h2 = jnp.maximum(h1 @ raw["w2"] + raw["b2"], 0.0)
    m = jnp.tanh(h2 @ raw["wm"] + raw["bm"])
    return (m * action_scale + action_bias)[:, :num_actions]


def reference_forward_bf16(state_aug, packed, num_actions):
    """Pure-JAX reference mirroring the kernel's bf16-MXU / f32-accumulate math."""
    w1, w2, wm, b = packed["w1"], packed["w2"], packed["wm"], packed["b"]
    hp, ap = w1.shape[1], wm.shape[1]
    b1, b2, bm = b[0:1, :hp], b[1:2, :hp], b[2:3, :ap]
    x = state_aug.astype(jnp.bfloat16)
    h1 = jnp.maximum(jnp.dot(x, w1, preferred_element_type=jnp.float32) + b1, 0.0)
    h2 = jnp.maximum(jnp.dot(h1.astype(jnp.bfloat16), w2,
                             preferred_element_type=jnp.float32) + b2, 0.0)
    m = jnp.tanh(jnp.dot(h2.astype(jnp.bfloat16), wm,
                         preferred_element_type=jnp.float32) + bm)
    if packed["apply_affine"]:
        m = m * b[3:4, :ap] + b[4:5, :ap]
    return m[:, :num_actions]


if __name__ == "__main__":
    # Small, module-consistent shapes.
    batch = 8
    state_dim = 12
    dim_state_with_fake = 16          # -> num_fake_features = 4
    hidden_dim = 32                   # args.num_hid_neurons
    num_actions = 8
    num_fake = dim_state_with_fake - state_dim
    fake_noise_std = 0.1

    key = jax.random.PRNGKey(0)
    k_state, k_params = jax.random.split(key, 2)
    state = jax.random.normal(k_state, (batch, state_dim), jnp.float32)

    raw = init_params(k_params, dim_state_with_fake, hidden_dim, num_actions)
    packed = pack_params(raw)         # action_space is None -> identity affine

    # --- Check 1: deterministic path (noise std = 0 -> fake columns are exactly 0)
    out0 = deterministic_policy_forward(state, packed, num_actions, seed=123,
                                        fake_noise_std=0.0,
                                        num_fake_features=num_fake)
    out0 = jax.block_until_ready(out0)
    state_aug0 = jnp.concatenate(
        [state, jnp.zeros((batch, num_fake), jnp.float32)], axis=1)
    ref_b = reference_forward_bf16(state_aug0, packed, num_actions)
    ref_f = reference_forward_f32(state_aug0, raw, num_actions)
    assert out0.shape == (batch, num_actions)
    assert jnp.allclose(out0, ref_b, atol=1e-3, rtol=1e-3), "mismatch vs bf16 reference"
    # Policy-level tolerance vs the true f32 (PyTorch-style) math: bf16-MXU drift only.
    assert jnp.allclose(out0, ref_f, atol=5e-2, rtol=5e-2), "mismatch vs f32 reference"

    # --- Check 2: noisy path (in-kernel hardware-PRNG fake features) — smoke test
    out1 = deterministic_policy_forward(state, packed, num_actions, seed=123,
                                        fake_noise_std=fake_noise_std,
                                        num_fake_features=num_fake)
    out1 = jax.block_until_ready(out1)
    assert out1.shape == (batch, num_actions)
    assert bool(jnp.all(jnp.isfinite(out1)))
    assert bool(jnp.all(jnp.abs(out1) <= 1.0 + 1e-6))   # tanh-bounded (identity affine)

    print("KERNEL_OK")
</pallas_src>

<mosaic_0001>
module attributes {stable_mosaic.version = 11 : i64} {
  func.func @kernel(%arg0: i32, %arg1: memref<1xi32, #tpu.memory_space<smem>>, %arg2: memref<8x16xbf16, #tpu.memory_space<vmem>>, %arg3: memref<16x128xbf16, #tpu.memory_space<vmem>>, %arg4: memref<128x128xbf16, #tpu.memory_space<vmem>>, %arg5: memref<128x128xbf16, #tpu.memory_space<vmem>>, %arg6: memref<5x128xf32, #tpu.memory_space<vmem>>, %arg7: memref<8x128xf32, #tpu.memory_space<vmem>>) attributes {dimension_semantics = [#tpu.dimension_semantics<parallel>], iteration_bounds = array<i64: 1>, scalar_prefetch = 0 : i64, scratch_operands = 0 : i64, tpu.core_type = #tpu.core_type<tc>, window_params = [{transform_indices = @transform_0, window_bounds = array<i64: 1>}, {transform_indices = @transform_1, window_bounds = array<i64: 8, 16>}, {pipeline_mode = #tpu.pipeline_mode<synchronous>, transform_indices = @transform_2, window_bounds = array<i64: 16, 128>}, {pipeline_mode = #tpu.pipeline_mode<synchronous>, transform_indices = @transform_3, window_bounds = array<i64: 128, 128>}, {pipeline_mode = #tpu.pipeline_mode<synchronous>, transform_indices = @transform_4, window_bounds = array<i64: 128, 128>}, {pipeline_mode = #tpu.pipeline_mode<synchronous>, transform_indices = @transform_5, window_bounds = array<i64: 5, 128>}, {transform_indices = @transform_6, window_bounds = array<i64: 8, 128>}]} {
    %c0 = arith.constant 0 : index
    %c0_0 = arith.constant 0 : index
    %0 = vector.load %arg2[%c0, %c0_0] : memref<8x16xbf16, #tpu.memory_space<vmem>>, vector<8x16xbf16>
    %c0_1 = arith.constant 0 : index
    %c0_2 = arith.constant 0 : index
    %1 = vector.load %arg6[%c0_1, %c0_2] : memref<5x128xf32, #tpu.memory_space<vmem>>, vector<5x128xf32>
    %2 = vector.extract_strided_slice %1 {offsets = [0, 0], sizes = [1, 128], strides = [1, 1]} : vector<5x128xf32> to vector<1x128xf32>
    %3 = vector.extract_strided_slice %1 {offsets = [1, 0], sizes = [1, 128], strides = [1, 1]} : vector<5x128xf32> to vector<1x128xf32>
    %4 = vector.extract_strided_slice %1 {offsets = [2, 0], sizes = [1, 128], strides = [1, 1]} : vector<5x128xf32> to vector<1x128xf32>
    %c0_3 = arith.constant 0 : index
    %5 = memref.load %arg1[%c0_3] : memref<1xi32, #tpu.memory_space<smem>>
    "tpu.prng_set_seed_32"(%5, %arg0) : (i32, i32) -> ()
    %c0_i32 = arith.constant 0 : i32
    %c0_i32_4 = arith.constant 0 : i32
    %cst = arith.constant -0.99999994 : f32
    %cst_5 = arith.constant 1.000000e+00 : f32
    %6 = vector.broadcast %cst : f32 to vector<1x1xf32>
    %7 = vector.broadcast %cst_5 : f32 to vector<1x1xf32>
    %8 = "tpu.prng_random_bits"() : () -> vector<8x16xi32>
    %c9_i32 = arith.constant 9 : i32
    %9 = vector.broadcast %c9_i32 : i32 to vector<8x16xi32>
    %10 = arith.shrui %8, %9 : vector<8x16xi32>
    %c1065353216_i32 = arith.constant 1065353216 : i32
    %11 = vector.broadcast %c1065353216_i32 : i32 to vector<8x16xi32>
    %12 = arith.ori %10, %11 : vector<8x16xi32>
    %13 = tpu.bitcast %12 : vector<8x16xi32> -> vector<8x16xf32>
    %cst_6 = arith.constant 1.000000e+00 : f32
    %14 = vector.broadcast %cst_6 : f32 to vector<8x16xf32>
    %15 = arith.subf %13, %14 : vector<8x16xf32>
    %16 = arith.subf %7, %6 : vector<1x1xf32>
    %17 = vector.broadcast %16 : vector<1x1xf32> to vector<8x16xf32>
    %18 = arith.mulf %15, %17 : vector<8x16xf32>
    %19 = vector.broadcast %6 : vector<1x1xf32> to vector<8x16xf32>
    %20 = arith.addf %18, %19 : vector<8x16xf32>
    %21 = vector.broadcast %6 : vector<1x1xf32> to vector<8x16xf32>
    %22 = arith.maximumf %21, %20 : vector<8x16xf32>
    %cst_7 = arith.constant 0.000000e+00 : f32
    %23 = vector.broadcast %cst_7 : f32 to vector<8x16xf32>
    %24 = arith.subf %23, %22 : vector<8x16xf32>
    %25 = arith.mulf %22, %24 : vector<8x16xf32>
    %26 = math.log1p %25 : vector<8x16xf32>
    %cst_8 = arith.constant 0.000000e+00 : f32
    %27 = vector.broadcast %cst_8 : f32 to vector<8x16xf32>
    %28 = arith.subf %27, %26 : vector<8x16xf32>
    %cst_9 = arith.constant 5.000000e+00 : f32
    %29 = vector.broadcast %cst_9 : f32 to vector<8x16xf32>
    %30 = arith.cmpf olt, %28, %29 : vector<8x16xf32>
    %cst_10 = arith.constant 2.500000e+00 : f32
    %31 = vector.broadcast %cst_10 : f32 to vector<8x16xf32>
    %32 = arith.subf %28, %31 : vector<8x16xf32>
    %33 = math.sqrt %28 : vector<8x16xf32>
    %cst_11 = arith.constant 3.000000e+00 : f32
    %34 = vector.broadcast %cst_11 : f32 to vector<8x16xf32>
    %35 = arith.subf %33, %34 : vector<8x16xf32>
    %36 = arith.select %30, %32, %35 : vector<8x16xi1>, vector<8x16xf32>
    %cst_12 = arith.constant 2.81022636E-8 : f32
    %cst_13 = arith.constant -2.00214257E-4 : f32
    %37 = vector.broadcast %cst_12 : f32 to vector<8x16xf32>
    %38 = vector.broadcast %cst_13 : f32 to vector<8x16xf32>
    %39 = arith.select %30, %37, %38 : vector<8x16xi1>, vector<8x16xf32>
    %cst_14 = arith.constant 3.43273939E-7 : f32
    %cst_15 = arith.constant 1.00950558E-4 : f32
    %40 = vector.broadcast %cst_14 : f32 to vector<8x16xf32>
    %41 = vector.broadcast %cst_15 : f32 to vector<8x16xf32>
    %42 = arith.select %30, %40, %41 : vector<8x16xi1>, vector<8x16xf32>
    %43 = arith.mulf %39, %36 : vector<8x16xf32>
    %44 = arith.addf %42, %43 : vector<8x16xf32>
    %cst_16 = arith.constant -3.5233877E-6 : f32
    %cst_17 = arith.constant 0.00134934322 : f32
    %45 = vector.broadcast %cst_16 : f32 to vector<8x16xf32>
    %46 = vector.broadcast %cst_17 : f32 to vector<8x16xf32>
    %47 = arith.select %30, %45, %46 : vector<8x16xi1>, vector<8x16xf32>
    %48 = arith.mulf %44, %36 : vector<8x16xf32>
    %49 = arith.addf %47, %48 : vector<8x16xf32>
    %cst_18 = arith.constant -4.39150654E-6 : f32
    %cst_19 = arith.constant -0.00367342844 : f32
    %50 = vector.broadcast %cst_18 : f32 to vector<8x16xf32>
    %51 = vector.broadcast %cst_19 : f32 to vector<8x16xf32>
    %52 = arith.select %30, %50, %51 : vector<8x16xi1>, vector<8x16xf32>
    %53 = arith.mulf %49, %36 : vector<8x16xf32>
    %54 = arith.addf %52, %53 : vector<8x16xf32>
    %cst_20 = arith.constant 2.1858087E-4 : f32
    %cst_21 = arith.constant 0.00573950773 : f32
    %55 = vector.broadcast %cst_20 : f32 to vector<8x16xf32>
    %56 = vector.broadcast %cst_21 : f32 to vector<8x16xf32>
    %57 = arith.select %30, %55, %56 : vector<8x16xi1>, vector<8x16xf32>
    %58 = arith.mulf %54, %36 : vector<8x16xf32>
    %59 = arith.addf %57, %58 : vector<8x16xf32>
    %cst_22 = arith.constant -0.00125372503 : f32
    %cst_23 = arith.constant -0.0076224613 : f32
    %60 = vector.broadcast %cst_22 : f32 to vector<8x16xf32>
    %61 = vector.broadcast %cst_23 : f32 to vector<8x16xf32>
    %62 = arith.select %30, %60, %61 : vector<8x16xi1>, vector<8x16xf32>
    %63 = arith.mulf %59, %36 : vector<8x16xf32>
    %64 = arith.addf %62, %63 : vector<8x16xf32>
    %cst_24 = arith.constant -0.00417768164 : f32
    %cst_25 = arith.constant 0.00943887047 : f32
    %65 = vector.broadcast %cst_24 : f32 to vector<8x16xf32>
    %66 = vector.broadcast %cst_25 : f32 to vector<8x16xf32>
    %67 = arith.select %30, %65, %66 : vector<8x16xi1>, vector<8x16xf32>
    %68 = arith.mulf %64, %36 : vector<8x16xf32>
    %69 = arith.addf %67, %68 : vector<8x16xf32>
    %cst_26 = arith.constant 0.246640727 : f32
    %cst_27 = arith.constant 1.00167406 : f32
    %70 = vector.broadcast %cst_26 : f32 to vector<8x16xf32>
    %71 = vector.broadcast %cst_27 : f32 to vector<8x16xf32>
    %72 = arith.select %30, %70, %71 : vector<8x16xi1>, vector<8x16xf32>
    %73 = arith.mulf %69, %36 : vector<8x16xf32>
    %74 = arith.addf %72, %73 : vector<8x16xf32>
    %cst_28 = arith.constant 1.50140941 : f32
    %cst_29 = arith.constant 2.83297682 : f32
    %75 = vector.broadcast %cst_28 : f32 to vector<8x16xf32>
    %76 = vector.broadcast %cst_29 : f32 to vector<8x16xf32>
    %77 = arith.select %30, %75, %76 : vector<8x16xi1>, vector<8x16xf32>
    %78 = arith.mulf %74, %36 : vector<8x16xf32>
    %79 = arith.addf %77, %78 : vector<8x16xf32>
    %80 = math.absf %22 : vector<8x16xf32>
    %cst_30 = arith.constant 1.000000e+00 : f32
    %81 = vector.broadcast %cst_30 : f32 to vector<8x16xf32>
    %82 = arith.cmpf oeq, %80, %81 : vector<8x16xf32>
    %cst_31 = arith.constant 0x7F800000 : f32
    %83 = vector.broadcast %cst_31 : f32 to vector<8x16xf32>
    %84 = arith.mulf %83, %22 : vector<8x16xf32>
    %85 = arith.mulf %79, %22 : vector<8x16xf32>
    %86 = arith.select %82, %84, %85 : vector<8x16xi1>, vector<8x16xf32>
    %cst_32 = arith.constant 1.41421354 : f32
    %87 = vector.broadcast %cst_32 : f32 to vector<8x16xf32>
    %88 = arith.mulf %87, %86 : vector<8x16xf32>
    %89 = tpu.iota {dimensions = array<i32: 1>} : vector<8x16xi32>
    %c12_i32 = arith.constant 12 : i32
    %90 = vector.broadcast %c12_i32 : i32 to vector<8x16xi32>
    %91 = arith.cmpi sge, %89, %90 : vector<8x16xi32>
    %cst_33 = arith.constant 0.000000e+00 : f32
    %92 = vector.broadcast %cst_33 : f32 to vector<8x16xf32>
    %93 = arith.mulf %92, %88 : vector<8x16xf32>
    %cst_34 = arith.constant 0.000000e+00 : f32
    %94 = vector.broadcast %cst_34 : f32 to vector<8x16xf32>
    %95 = arith.select %91, %93, %94 : vector<8x16xi1>, vector<8x16xf32>
    %96 = arith.truncf %95 : vector<8x16xf32> to vector<8x16xbf16>
    %97 = arith.addf %0, %96 : vector<8x16xbf16>
    %c0_35 = arith.constant 0 : index
    %c0_36 = arith.constant 0 : index
    %98 = vector.load %arg3[%c0_35, %c0_36] : memref<16x128xbf16, #tpu.memory_space<vmem>>, vector<16x128xbf16>
    %cst_37 = arith.constant dense<0.000000e+00> : vector<8x128xf32>
    %99 = tpu.matmul %97, %98, %cst_37 {dimension_numbers = #tpu.dot_dimension_numbers<[1], [0], [0], [1], [0, 0, 1, 1], [], []>} : vector<8x16xbf16>, vector<16x128xbf16>, vector<8x128xf32> -> vector<8x128xf32>
    %100 = vector.broadcast %2 : vector<1x128xf32> to vector<8x128xf32>
    %101 = arith.addf %99, %100 : vector<8x128xf32>
    %cst_38 = arith.constant 0.000000e+00 : f32
    %102 = vector.broadcast %cst_38 : f32 to vector<8x128xf32>
    %103 = arith.maximumf %101, %102 : vector<8x128xf32>
    %104 = arith.truncf %103 : vector<8x128xf32> to vector<8x128xbf16>
    %c0_39 = arith.constant 0 : index
    %c0_40 = arith.constant 0 : index
    %105 = vector.load %arg4[%c0_39, %c0_40] : memref<128x128xbf16, #tpu.memory_space<vmem>>, vector<128x128xbf16>
    %cst_41 = arith.constant dense<0.000000e+00> : vector<8x128xf32>
    %106 = tpu.matmul %104, %105, %cst_41 {dimension_numbers = #tpu.dot_dimension_numbers<[1], [0], [0], [1], [0, 0, 1, 1], [], []>} : vector<8x128xbf16>, vector<128x128xbf16>, vector<8x128xf32> -> vector<8x128xf32>
    %107 = vector.broadcast %3 : vector<1x128xf32> to vector<8x128xf32>
    %108 = arith.addf %106, %107 : vector<8x128xf32>
    %cst_42 = arith.constant 0.000000e+00 : f32
    %109 = vector.broadcast %cst_42 : f32 to vector<8x128xf32>
    %110 = arith.maximumf %108, %109 : vector<8x128xf32>
    %111 = arith.truncf %110 : vector<8x128xf32> to vector<8x128xbf16>
    %c0_43 = arith.constant 0 : index
    %c0_44 = arith.constant 0 : index
    %112 = vector.load %arg5[%c0_43, %c0_44] : memref<128x128xbf16, #tpu.memory_space<vmem>>, vector<128x128xbf16>
    %cst_45 = arith.constant dense<0.000000e+00> : vector<8x128xf32>
    %113 = tpu.matmul %111, %112, %cst_45 {dimension_numbers = #tpu.dot_dimension_numbers<[1], [0], [0], [1], [0, 0, 1, 1], [], []>} : vector<8x128xbf16>, vector<128x128xbf16>, vector<8x128xf32> -> vector<8x128xf32>
    %114 = vector.broadcast %4 : vector<1x128xf32> to vector<8x128xf32>
    %115 = arith.addf %113, %114 : vector<8x128xf32>
    %116 = math.tanh %115 : vector<8x128xf32>
    %c0_46 = arith.constant 0 : index
    %c0_47 = arith.constant 0 : index
    %117 = vector.load %arg7[%c0_46, %c0_47] : memref<8x128xf32, #tpu.memory_space<vmem>>, vector<8x128xf32>
    tpu.vector_store %arg7[%c0_46, %c0_47], %116 {strides = array<i32>} : memref<8x128xf32, #tpu.memory_space<vmem>>, vector<8x128xf32>,
    return
  }
  func.func @transform_0(%arg0: i32) -> i32 {
    %c0_i32 = arith.constant 0 : i32
    %c0_i32_0 = arith.constant 0 : i32
    return %c0_i32 : i32
  }
  func.func @transform_1(%arg0: i32) -> (i32, i32) {
    %c0_i32 = arith.constant 0 : i32
    %c0_i32_0 = arith.constant 0 : i32
    return %arg0, %c0_i32 : i32, i32
  }
  func.func @transform_2(%arg0: i32) -> (i32, i32) {
    %c0_i32 = arith.constant 0 : i32
    %c0_i32_0 = arith.constant 0 : i32
    %c0_i32_1 = arith.constant 0 : i32
    return %c0_i32, %c0_i32_0 : i32, i32
  }
  func.func @transform_3(%arg0: i32) -> (i32, i32) {
    %c0_i32 = arith.constant 0 : i32
    %c0_i32_0 = arith.constant 0 : i32
    %c0_i32_1 = arith.constant 0 : i32
    return %c0_i32, %c0_i32_0 : i32, i32
  }
  func.func @transform_4(%arg0: i32) -> (i32, i32) {
    %c0_i32 = arith.constant 0 : i32
    %c0_i32_0 = arith.constant 0 : i32
    %c0_i32_1 = arith.constant 0 : i32
    return %c0_i32, %c0_i32_0 : i32, i32
  }
  func.func @transform_5(%arg0: i32) -> (i32, i32) {
    %c0_i32 = arith.constant 0 : i32
    %c0_i32_0 = arith.constant 0 : i32
    %c0_i32_1 = arith.constant 0 : i32
    return %c0_i32, %c0_i32_0 : i32, i32
  }
  func.func @transform_6(%arg0: i32) -> (i32, i32) {
    %c0_i32 = arith.constant 0 : i32
    %c0_i32_0 = arith.constant 0 : i32
    return %arg0, %c0_i32 : i32, i32
  }
}

module attributes {stable_mosaic.version = 11 : i64} {
  func.func @kernel(%arg0: i32, %arg1: memref<1xi32, #tpu.memory_space<smem>>, %arg2: memref<8x16xbf16, #tpu.memory_space<vmem>>, %arg3: memref<16x128xbf16, #tpu.memory_space<vmem>>, %arg4: memref<128x128xbf16, #tpu.memory_space<vmem>>, %arg5: memref<128x128xbf16, #tpu.memory_space<vmem>>, %arg6: memref<5x128xf32, #tpu.memory_space<vmem>>, %arg7: memref<8x128xf32, #tpu.memory_space<vmem>>) attributes {dimension_semantics = [#tpu.dimension_semantics<parallel>], iteration_bounds = array<i64: 1>, scalar_prefetch = 0 : i64, scratch_operands = 0 : i64, tpu.core_type = #tpu.core_type<tc>, window_params = [{transform_indices = @transform_0, window_bounds = array<i64: 1>}, {transform_indices = @transform_1, window_bounds = array<i64: 8, 16>}, {pipeline_mode = #tpu.pipeline_mode<synchronous>, transform_indices = @transform_2, window_bounds = array<i64: 16, 128>}, {pipeline_mode = #tpu.pipeline_mode<synchronous>, transform_indices = @transform_3, window_bounds = array<i64: 128, 128>}, {pipeline_mode = #tpu.pipeline_mode<synchronous>, transform_indices = @transform_4, window_bounds = array<i64: 128, 128>}, {pipeline_mode = #tpu.pipeline_mode<synchronous>, transform_indices = @transform_5, window_bounds = array<i64: 5, 128>}, {transform_indices = @transform_6, window_bounds = array<i64: 8, 128>}]} {
    %c0 = arith.constant 0 : index
    %c0_0 = arith.constant 0 : index
    %0 = vector.load %arg2[%c0, %c0_0] : memref<8x16xbf16, #tpu.memory_space<vmem>>, vector<8x16xbf16>
    %c0_1 = arith.constant 0 : index
    %c0_2 = arith.constant 0 : index
    %1 = vector.load %arg6[%c0_1, %c0_2] : memref<5x128xf32, #tpu.memory_space<vmem>>, vector<5x128xf32>
    %2 = vector.extract_strided_slice %1 {offsets = [0, 0], sizes = [1, 128], strides = [1, 1]} : vector<5x128xf32> to vector<1x128xf32>
    %3 = vector.extract_strided_slice %1 {offsets = [1, 0], sizes = [1, 128], strides = [1, 1]} : vector<5x128xf32> to vector<1x128xf32>
    %4 = vector.extract_strided_slice %1 {offsets = [2, 0], sizes = [1, 128], strides = [1, 1]} : vector<5x128xf32> to vector<1x128xf32>
    %c0_3 = arith.constant 0 : index
    %5 = memref.load %arg1[%c0_3] : memref<1xi32, #tpu.memory_space<smem>>
    "tpu.prng_set_seed_32"(%5, %arg0) : (i32, i32) -> ()
    %c0_i32 = arith.constant 0 : i32
    %c0_i32_4 = arith.constant 0 : i32
    %cst = arith.constant -0.99999994 : f32
    %cst_5 = arith.constant 1.000000e+00 : f32
    %6 = vector.broadcast %cst : f32 to vector<1x1xf32>
    %7 = vector.broadcast %cst_5 : f32 to vector<1x1xf32>
    %8 = "tpu.prng_random_bits"() : () -> vector<8x16xi32>
    %c9_i32 = arith.constant 9 : i32
    %9 = vector.broadcast %c9_i32 : i32 to vector<8x16xi32>
    %10 = arith.shrui %8, %9 : vector<8x16xi32>
    %c1065353216_i32 = arith.constant 1065353216 : i32
    %11 = vector.broadcast %c1065353216_i32 : i32 to vector<8x16xi32>
    %12 = arith.ori %10, %11 : vector<8x16xi32>
    %13 = tpu.bitcast %12 : vector<8x16xi32> -> vector<8x16xf32>
    %cst_6 = arith.constant 1.000000e+00 : f32
    %14 = vector.broadcast %cst_6 : f32 to vector<8x16xf32>
    %15 = arith.subf %13, %14 : vector<8x16xf32>
    %16 = arith.subf %7, %6 : vector<1x1xf32>
    %17 = vector.broadcast %16 : vector<1x1xf32> to vector<8x16xf32>
    %18 = arith.mulf %15, %17 : vector<8x16xf32>
    %19 = vector.broadcast %6 : vector<1x1xf32> to vector<8x16xf32>
    %20 = arith.addf %18, %19 : vector<8x16xf32>
    %21 = vector.broadcast %6 : vector<1x1xf32> to vector<8x16xf32>
    %22 = arith.maximumf %21, %20 : vector<8x16xf32>
    %cst_7 = arith.constant 0.000000e+00 : f32
    %23 = vector.broadcast %cst_7 : f32 to vector<8x16xf32>
    %24 = arith.subf %23, %22 : vector<8x16xf32>
    %25 = arith.mulf %22, %24 : vector<8x16xf32>
    %26 = math.log1p %25 : vector<8x16xf32>
    %cst_8 = arith.constant 0.000000e+00 : f32
    %27 = vector.broadcast %cst_8 : f32 to vector<8x16xf32>
    %28 = arith.subf %27, %26 : vector<8x16xf32>
    %cst_9 = arith.constant 5.000000e+00 : f32
    %29 = vector.broadcast %cst_9 : f32 to vector<8x16xf32>
    %30 = arith.cmpf olt, %28, %29 : vector<8x16xf32>
    %cst_10 = arith.constant 2.500000e+00 : f32
    %31 = vector.broadcast %cst_10 : f32 to vector<8x16xf32>
    %32 = arith.subf %28, %31 : vector<8x16xf32>
    %33 = math.sqrt %28 : vector<8x16xf32>
    %cst_11 = arith.constant 3.000000e+00 : f32
    %34 = vector.broadcast %cst_11 : f32 to vector<8x16xf32>
    %35 = arith.subf %33, %34 : vector<8x16xf32>
    %36 = arith.select %30, %32, %35 : vector<8x16xi1>, vector<8x16xf32>
    %cst_12 = arith.constant 2.81022636E-8 : f32
    %cst_13 = arith.constant -2.00214257E-4 : f32
    %37 = vector.broadcast %cst_12 : f32 to vector<8x16xf32>
    %38 = vector.broadcast %cst_13 : f32 to vector<8x16xf32>
    %39 = arith.select %30, %37, %38 : vector<8x16xi1>, vector<8x16xf32>
    %cst_14 = arith.constant 3.43273939E-7 : f32
    %cst_15 = arith.constant 1.00950558E-4 : f32
    %40 = vector.broadcast %cst_14 : f32 to vector<8x16xf32>
    %41 = vector.broadcast %cst_15 : f32 to vector<8x16xf32>
    %42 = arith.select %30, %40, %41 : vector<8x16xi1>, vector<8x16xf32>
    %43 = arith.mulf %39, %36 : vector<8x16xf32>
    %44 = arith.addf %42, %43 : vector<8x16xf32>
    %cst_16 = arith.constant -3.5233877E-6 : f32
    %cst_17 = arith.constant 0.00134934322 : f32
    %45 = vector.broadcast %cst_16 : f32 to vector<8x16xf32>
    %46 = vector.broadcast %cst_17 : f32 to vector<8x16xf32>
    %47 = arith.select %30, %45, %46 : vector<8x16xi1>, vector<8x16xf32>
    %48 = arith.mulf %44, %36 : vector<8x16xf32>
    %49 = arith.addf %47, %48 : vector<8x16xf32>
    %cst_18 = arith.constant -4.39150654E-6 : f32
    %cst_19 = arith.constant -0.00367342844 : f32
    %50 = vector.broadcast %cst_18 : f32 to vector<8x16xf32>
    %51 = vector.broadcast %cst_19 : f32 to vector<8x16xf32>
    %52 = arith.select %30, %50, %51 : vector<8x16xi1>, vector<8x16xf32>
    %53 = arith.mulf %49, %36 : vector<8x16xf32>
    %54 = arith.addf %52, %53 : vector<8x16xf32>
    %cst_20 = arith.constant 2.1858087E-4 : f32
    %cst_21 = arith.constant 0.00573950773 : f32
    %55 = vector.broadcast %cst_20 : f32 to vector<8x16xf32>
    %56 = vector.broadcast %cst_21 : f32 to vector<8x16xf32>
    %57 = arith.select %30, %55, %56 : vector<8x16xi1>, vector<8x16xf32>
    %58 = arith.mulf %54, %36 : vector<8x16xf32>
    %59 = arith.addf %57, %58 : vector<8x16xf32>
    %cst_22 = arith.constant -0.00125372503 : f32
    %cst_23 = arith.constant -0.0076224613 : f32
    %60 = vector.broadcast %cst_22 : f32 to vector<8x16xf32>
    %61 = vector.broadcast %cst_23 : f32 to vector<8x16xf32>
    %62 = arith.select %30, %60, %61 : vector<8x16xi1>, vector<8x16xf32>
    %63 = arith.mulf %59, %36 : vector<8x16xf32>
    %64 = arith.addf %62, %63 : vector<8x16xf32>
    %cst_24 = arith.constant -0.00417768164 : f32
    %cst_25 = arith.constant 0.00943887047 : f32
    %65 = vector.broadcast %cst_24 : f32 to vector<8x16xf32>
    %66 = vector.broadcast %cst_25 : f32 to vector<8x16xf32>
    %67 = arith.select %30, %65, %66 : vector<8x16xi1>, vector<8x16xf32>
    %68 = arith.mulf %64, %36 : vector<8x16xf32>
    %69 = arith.addf %67, %68 : vector<8x16xf32>
    %cst_26 = arith.constant 0.246640727 : f32
    %cst_27 = arith.constant 1.00167406 : f32
    %70 = vector.broadcast %cst_26 : f32 to vector<8x16xf32>
    %71 = vector.broadcast %cst_27 : f32 to vector<8x16xf32>
    %72 = arith.select %30, %70, %71 : vector<8x16xi1>, vector<8x16xf32>
    %73 = arith.mulf %69, %36 : vector<8x16xf32>
    %74 = arith.addf %72, %73 : vector<8x16xf32>
    %cst_28 = arith.constant 1.50140941 : f32
    %cst_29 = arith.constant 2.83297682 : f32
    %75 = vector.broadcast %cst_28 : f32 to vector<8x16xf32>
    %76 = vector.broadcast %cst_29 : f32 to vector<8x16xf32>
    %77 = arith.select %30, %75, %76 : vector<8x16xi1>, vector<8x16xf32>
    %78 = arith.mulf %74, %36 : vector<8x16xf32>
    %79 = arith.addf %77, %78 : vector<8x16xf32>
    %80 = math.absf %22 : vector<8x16xf32>
    %cst_30 = arith.constant 1.000000e+00 : f32
    %81 = vector.broadcast %cst_30 : f32 to vector<8x16xf32>
    %82 = arith.cmpf oeq, %80, %81 : vector<8x16xf32>
    %cst_31 = arith.constant 0x7F800000 : f32
    %83 = vector.broadcast %cst_31 : f32 to vector<8x16xf32>
    %84 = arith.mulf %83, %22 : vector<8x16xf32>
    %85 = arith.mulf %79, %22 : vector<8x16xf32>
    %86 = arith.select %82, %84, %85 : vector<8x16xi1>, vector<8x16xf32>
    %cst_32 = arith.constant 1.41421354 : f32
    %87 = vector.broadcast %cst_32 : f32 to vector<8x16xf32>
    %88 = arith.mulf %87, %86 : vector<8x16xf32>
    %89 = tpu.iota {dimensions = array<i32: 1>} : vector<8x16xi32>
    %c12_i32 = arith.constant 12 : i32
    %90 = vector.broadcast %c12_i32 : i32 to vector<8x16xi32>
    %91 = arith.cmpi sge, %89, %90 : vector<8x16xi32>
    %cst_33 = arith.constant 0.000000e+00 : f32
    %92 = vector.broadcast %cst_33 : f32 to vector<8x16xf32>
    %93 = arith.mulf %92, %88 : vector<8x16xf32>
    %cst_34 = arith.constant 0.000000e+00 : f32
    %94 = vector.broadcast %cst_34 : f32 to vector<8x16xf32>
    %95 = arith.select %91, %93, %94 : vector<8x16xi1>, vector<8x16xf32>
    %96 = arith.truncf %95 : vector<8x16xf32> to vector<8x16xbf16>
    %97 = arith.addf %0, %96 : vector<8x16xbf16>
    %c0_35 = arith.constant 0 : index
    %c0_36 = arith.constant 0 : index
    %98 = vector.load %arg3[%c0_35, %c0_36] : memref<16x128xbf16, #tpu.memory_space<vmem>>, vector<16x128xbf16>
    %cst_37 = arith.constant dense<0.000000e+00> : vector<8x128xf32>
    %99 = tpu.matmul %97, %98, %cst_37 {dimension_numbers = #tpu.dot_dimension_numbers<[1], [0], [0], [1], [0, 0, 1, 1], [], []>} : vector<8x16xbf16>, vector<16x128xbf16>, vector<8x128xf32> -> vector<8x128xf32>
    %100 = vector.broadcast %2 : vector<1x128xf32> to vector<8x128xf32>
    %101 = arith.addf %99, %100 : vector<8x128xf32>
    %cst_38 = arith.constant 0.000000e+00 : f32
    %102 = vector.broadcast %cst_38 : f32 to vector<8x128xf32>
    %103 = arith.maximumf %101, %102 : vector<8x128xf32>
    %104 = arith.truncf %103 : vector<8x128xf32> to vector<8x128xbf16>
    %c0_39 = arith.constant 0 : index
    %c0_40 = arith.constant 0 : index
    %105 = vector.load %arg4[%c0_39, %c0_40] : memref<128x128xbf16, #tpu.memory_space<vmem>>, vector<128x128xbf16>
    %cst_41 = arith.constant dense<0.000000e+00> : vector<8x128xf32>
    %106 = tpu.matmul %104, %105, %cst_41 {dimension_numbers = #tpu.dot_dimension_numbers<[1], [0], [0], [1], [0, 0, 1, 1], [], []>} : vector<8x128xbf16>, vector<128x128xbf16>, vector<8x128xf32> -> vector<8x128xf32>
    %107 = vector.broadcast %3 : vector<1x128xf32> to vector<8x128xf32>
    %108 = arith.addf %106, %107 : vector<8x128xf32>
    %cst_42 = arith.constant 0.000000e+00 : f32
    %109 = vector.broadcast %cst_42 : f32 to vector<8x128xf32>
    %110 = arith.maximumf %108, %109 : vector<8x128xf32>
    %111 = arith.truncf %110 : vector<8x128xf32> to vector<8x128xbf16>
    %c0_43 = arith.constant 0 : index
    %c0_44 = arith.constant 0 : index
    %112 = vector.load %arg5[%c0_43, %c0_44] : memref<128x128xbf16, #tpu.memory_space<vmem>>, vector<128x128xbf16>
    %cst_45 = arith.constant dense<0.000000e+00> : vector<8x128xf32>
    %113 = tpu.matmul %111, %112, %cst_45 {dimension_numbers = #tpu.dot_dimension_numbers<[1], [0], [0], [1], [0, 0, 1, 1], [], []>} : vector<8x128xbf16>, vector<128x128xbf16>, vector<8x128xf32> -> vector<8x128xf32>
    %114 = vector.broadcast %4 : vector<1x128xf32> to vector<8x128xf32>
    %115 = arith.addf %113, %114 : vector<8x128xf32>
    %116 = math.tanh %115 : vector<8x128xf32>
    %c0_46 = arith.constant 0 : index
    %c0_47 = arith.constant 0 : index
    %117 = vector.load %arg7[%c0_46, %c0_47] : memref<8x128xf32, #tpu.memory_space<vmem>>, vector<8x128xf32>
    tpu.vector_store %arg7[%c0_46, %c0_47], %116 {strides = array<i32>} : memref<8x128xf32, #tpu.memory_space<vmem>>, vector<8x128xf32>,
    return
  }
  func.func @transform_0(%arg0: i32) -> i32 {
    %c0_i32 = arith.constant 0 : i32
    %c0_i32_0 = arith.constant 0 : i32
    return %c0_i32 : i32
  }
  func.func @transform_1(%arg0: i32) -> (i32, i32) {
    %c0_i32 = arith.constant 0 : i32
    %c0_i32_0 = arith.constant 0 : i32
    return %arg0, %c0_i32 : i32, i32
  }
  func.func @transform_2(%arg0: i32) -> (i32, i32) {
    %c0_i32 = arith.constant 0 : i32
    %c0_i32_0 = arith.constant 0 : i32
    %c0_i32_1 = arith.constant 0 : i32
    return %c0_i32, %c0_i32_0 : i32, i32
  }
  func.func @transform_3(%arg0: i32) -> (i32, i32) {
    %c0_i32 = arith.constant 0 : i32
    %c0_i32_0 = arith.constant 0 : i32
    %c0_i32_1 = arith.constant 0 : i32
    return %c0_i32, %c0_i32_0 : i32, i32
  }
  func.func @transform_4(%arg0: i32) -> (i32, i32) {
    %c0_i32 = arith.constant 0 : i32
    %c0_i32_0 = arith.constant 0 : i32
    %c0_i32_1 = arith.constant 0 : i32
    return %c0_i32, %c0_i32_0 : i32, i32
  }
  func.func @transform_5(%arg0: i32) -> (i32, i32) {
    %c0_i32 = arith.constant 0 : i32
    %c0_i32_0 = arith.constant 0 : i32
    %c0_i32_1 = arith.constant 0 : i32
    return %c0_i32, %c0_i32_0 : i32, i32
  }
  func.func @transform_6(%arg0: i32) -> (i32, i32) {
    %c0_i32 = arith.constant 0 : i32
    %c0_i32_0 = arith.constant 0 : i32
    return %arg0, %c0_i32 : i32, i32
  }
}

module attributes {stable_mosaic.version = 11 : i64} {
  func.func @kernel(%arg0: i32, %arg1: memref<8x16xbf16, #tpu.memory_space<vmem>>, %arg2: memref<16x128xbf16, #tpu.memory_space<vmem>>, %arg3: memref<128x128xbf16, #tpu.memory_space<vmem>>, %arg4: memref<128x128xbf16, #tpu.memory_space<vmem>>, %arg5: memref<5x128xf32, #tpu.memory_space<vmem>>, %arg6: memref<8x128xf32, #tpu.memory_space<vmem>>) attributes {dimension_semantics = [#tpu.dimension_semantics<parallel>], iteration_bounds = array<i64: 1>, scalar_prefetch = 0 : i64, scratch_operands = 0 : i64, tpu.core_type = #tpu.core_type<tc>, window_params = [{transform_indices = @transform_0, window_bounds = array<i64: 8, 16>}, {pipeline_mode = #tpu.pipeline_mode<synchronous>, transform_indices = @transform_1, window_bounds = array<i64: 16, 128>}, {pipeline_mode = #tpu.pipeline_mode<synchronous>, transform_indices = @transform_2, window_bounds = array<i64: 128, 128>}, {pipeline_mode = #tpu.pipeline_mode<synchronous>, transform_indices = @transform_3, window_bounds = array<i64: 128, 128>}, {pipeline_mode = #tpu.pipeline_mode<synchronous>, transform_indices = @transform_4, window_bounds = array<i64: 5, 128>}, {transform_indices = @transform_5, window_bounds = array<i64: 8, 128>}]} {
    %c0 = arith.constant 0 : index
    %c0_0 = arith.constant 0 : index
    %0 = vector.load %arg1[%c0, %c0_0] : memref<8x16xbf16, #tpu.memory_space<vmem>>, vector<8x16xbf16>
    %c0_1 = arith.constant 0 : index
    %c0_2 = arith.constant 0 : index
    %1 = vector.load %arg5[%c0_1, %c0_2] : memref<5x128xf32, #tpu.memory_space<vmem>>, vector<5x128xf32>
    %2 = vector.extract_strided_slice %1 {offsets = [0, 0], sizes = [1, 128], strides = [1, 1]} : vector<5x128xf32> to vector<1x128xf32>
    %3 = vector.extract_strided_slice %1 {offsets = [1, 0], sizes = [1, 128], strides = [1, 1]} : vector<5x128xf32> to vector<1x128xf32>
    %4 = vector.extract_strided_slice %1 {offsets = [2, 0], sizes = [1, 128], strides = [1, 1]} : vector<5x128xf32> to vector<1x128xf32>
    %c0_3 = arith.constant 0 : index
    %c0_4 = arith.constant 0 : index
    %5 = vector.load %arg2[%c0_3, %c0_4] : memref<16x128xbf16, #tpu.memory_space<vmem>>, vector<16x128xbf16>
    %cst = arith.constant dense<0.000000e+00> : vector<8x128xf32>
    %6 = tpu.matmul %0, %5, %cst {dimension_numbers = #tpu.dot_dimension_numbers<[1], [0], [0], [1], [0, 0, 1, 1], [], []>} : vector<8x16xbf16>, vector<16x128xbf16>, vector<8x128xf32> -> vector<8x128xf32>
    %7 = vector.broadcast %2 : vector<1x128xf32> to vector<8x128xf32>
    %8 = arith.addf %6, %7 : vector<8x128xf32>
    %cst_5 = arith.constant 0.000000e+00 : f32
    %9 = vector.broadcast %cst_5 : f32 to vector<8x128xf32>
    %10 = arith.maximumf %8, %9 : vector<8x128xf32>
    %11 = arith.truncf %10 : vector<8x128xf32> to vector<8x128xbf16>
    %c0_6 = arith.constant 0 : index
    %c0_7 = arith.constant 0 : index
    %12 = vector.load %arg3[%c0_6, %c0_7] : memref<128x128xbf16, #tpu.memory_space<vmem>>, vector<128x128xbf16>
    %cst_8 = arith.constant dense<0.000000e+00> : vector<8x128xf32>
    %13 = tpu.matmul %11, %12, %cst_8 {dimension_numbers = #tpu.dot_dimension_numbers<[1], [0], [0], [1], [0, 0, 1, 1], [], []>} : vector<8x128xbf16>, vector<128x128xbf16>, vector<8x128xf32> -> vector<8x128xf32>
    %14 = vector.broadcast %3 : vector<1x128xf32> to vector<8x128xf32>
    %15 = arith.addf %13, %14 : vector<8x128xf32>
    %cst_9 = arith.constant 0.000000e+00 : f32
    %16 = vector.broadcast %cst_9 : f32 to vector<8x128xf32>
    %17 = arith.maximumf %15, %16 : vector<8x128xf32>
    %18 = arith.truncf %17 : vector<8x128xf32> to vector<8x128xbf16>
    %c0_10 = arith.constant 0 : index
    %c0_11 = arith.constant 0 : index
    %19 = vector.load %arg4[%c0_10, %c0_11] : memref<128x128xbf16, #tpu.memory_space<vmem>>, vector<128x128xbf16>
    %cst_12 = arith.constant dense<0.000000e+00> : vector<8x128xf32>
    %20 = tpu.matmul %18, %19, %cst_12 {dimension_numbers = #tpu.dot_dimension_numbers<[1], [0], [0], [1], [0, 0, 1, 1], [], []>} : vector<8x128xbf16>, vector<128x128xbf16>, vector<8x128xf32> -> vector<8x128xf32>
    %21 = vector.broadcast %4 : vector<1x128xf32> to vector<8x128xf32>
    %22 = arith.addf %20, %21 : vector<8x128xf32>
    %23 = math.tanh %22 : vector<8x128xf32>
    %c0_13 = arith.constant 0 : index
    %c0_14 = arith.constant 0 : index
    %24 = vector.load %arg6[%c0_13, %c0_14] : memref<8x128xf32, #tpu.memory_space<vmem>>, vector<8x128xf32>
    tpu.vector_store %arg6[%c0_13, %c0_14], %23 {strides = array<i32>} : memref<8x128xf32, #tpu.memory_space<vmem>>, vector<8x128xf32>,
    return
  }
  func.func @transform_0(%arg0: i32) -> (i32, i32) {
    %c0_i32 = arith.constant 0 : i32
    %c0_i32_0 = arith.constant 0 : i32
    return %arg0, %c0_i32 : i32, i32
  }
  func.func @transform_1(%arg0: i32) -> (i32, i32) {
    %c0_i32 = arith.constant 0 : i32
    %c0_i32_0 = arith.constant 0 : i32
    %c0_i32_1 = arith.constant 0 : i32
    return %c0_i32, %c0_i32_0 : i32, i32
  }
  func.func @transform_2(%arg0: i32) -> (i32, i32) {
    %c0_i32 = arith.constant 0 : i32
    %c0_i32_0 = arith.constant 0 : i32
    %c0_i32_1 = arith.constant 0 : i32
    return %c0_i32, %c0_i32_0 : i32, i32
  }
  func.func @transform_3(%arg0: i32) -> (i32, i32) {
    %c0_i32 = arith.constant 0 : i32
    %c0_i32_0 = arith.constant 0 : i32
    %c0_i32_1 = arith.constant 0 : i32
    return %c0_i32, %c0_i32_0 : i32, i32
  }
  func.func @transform_4(%arg0: i32) -> (i32, i32) {
    %c0_i32 = arith.constant 0 : i32
    %c0_i32_0 = arith.constant 0 : i32
    %c0_i32_1 = arith.constant 0 : i32
    return %c0_i32, %c0_i32_0 : i32, i32
  }
  func.func @transform_5(%arg0: i32) -> (i32, i32) {
    %c0_i32 = arith.constant 0 : i32
    %c0_i32_0 = arith.constant 0 : i32
    return %arg0, %c0_i32 : i32, i32
  }
}

</mosaic_0001>

<llo_original>
// kernel: tpu_custom_call.1
$region0: #{tpu_custom_call.1}
  #allocation0 [shape = 'u32[]', space=smem, size = 0x4, offset = 0x4, fixed_abs, tag = 'smem constant byte address 0x4 - core index']
  #allocation1 [shape = 'u32[144,128]{1,0:T(1,128)}', space=vmem, size = 0x12000, scoped, tag = 'internal scratch']
  #allocation2 [shape = 's32[1]{0:T(128)S(6)}', space=smem, size = 0x200, scoped, tag = 'scoped memory for tpu_custom_call.1']
  %s0 = inlined_call_operand.<no memory space> [shape: s32[1], index: 0, kind: input, shape index: {}]
  %s1 = inlined_call_operand.hbm [shape: bf16[8,16], index: 1, kind: input, shape index: {}]
  %s2 = inlined_call_operand.hbm [shape: bf16[16,128], index: 2, kind: input, shape index: {}]
  %s3 = inlined_call_operand.hbm [shape: bf16[128,128], index: 3, kind: input, shape index: {}]
  %s4 = inlined_call_operand.hbm [shape: bf16[128,128], index: 4, kind: input, shape index: {}]
  %s5 = inlined_call_operand.vmem [shape: f32[5,128], index: 5, kind: input, shape index: {}]
  %s6 = inlined_call_operand.hbm [shape: f32[8,128], index: 6, kind: output, shape index: {}]
  %s7 = sld [smem:[#allocation0]]
  $region50: #{tpu_custom_call.1} parent=0
    _
  %s9 = ssub.s32 1, %s7
  %s10 = scalar_select 0, %s9, %s7
  %11 = sst [smem:[#allocation2]] %s0
  $region1: #{tpu_custom_call.1} parent=0
    #allocation3 [shape = 'u8[2048]{0}', space=vmem, size = 0x800, scoped, tag = 'input window, operand 1, single buffered']
    #allocation4 [shape = 's32[1]{0}', space=sflag, size = 0x4, scoped, tag = 'scoped memory for tpu_custom_call.1']
    #allocation5 [shape = 's32[1]{0}', space=sflag, size = 0x4, scoped, tag = 'scoped memory for tpu_custom_call.1']
    #allocation6 [shape = 'u8[4096]{0}', space=vmem, size = 0x1000, scoped, tag = 'input window, operand 2, single buffered']
    #allocation7 [shape = 's32[1]{0}', space=sflag, size = 0x4, scoped, tag = 'scoped memory for tpu_custom_call.1']
    #allocation8 [shape = 'u8[32768]{0}', space=vmem, size = 0x8000, scoped, tag = 'input window, operand 3, single buffered']
    #allocation9 [shape = 'u8[32768]{0}', space=vmem, size = 0x8000, scoped, tag = 'input window, operand 4, single buffered']
    #allocation10 [shape = 's32[1]{0}', space=sflag, size = 0x4, scoped, tag = 'scoped memory for tpu_custom_call.1']
    #allocation11 [shape = 'u8[4096]{0}', space=vmem, size = 0x1000, scoped, tag = 'output window, operand 0, single buffered']
    %12 = vsyncpa [#allocation4], 0
    %13 = vsyncpa [#allocation7], 0
    %14 = vsyncpa [#allocation10], 0
    %15 = vsyncpa [#allocation5], 0
    // Predicated region
    $region2: #{tpu_custom_call.1} parent=1 // pred_check
      _
    $region3: #{tpu_custom_call.1} parent=1 // pred_check_branch
      %17 = sbr.rel (0) target = $region5
    $region4: #{tpu_custom_call.1} parent=1 // pred_region
      _
    $region5: #{tpu_custom_call.1} parent=1 // pred_fallthru
      _
    // Predicated region
    $region6: #{tpu_custom_call.1} parent=1 // pred_check
      _
    $region7: #{tpu_custom_call.1} parent=1 // pred_check_branch
      %19 = sbr.rel (0) target = $region9
    $region8: #{tpu_custom_call.1} parent=1 // pred_region
      %s21 = ssub.s32 64, 64
      %22 = vsyncadd [#allocation4], %s21
      %s24 = sshll.u32 [#allocation3], 4
      %s25 = int_to_ptr.vmem [resolvable:$true] %s24
      %27 = dma.hbm_to_vmem [thread:$0]  %s1, 64, %s25, [#allocation4]
    $region9: #{tpu_custom_call.1} parent=1 // pred_fallthru
      _
    // Predicated region
    $region10: #{tpu_custom_call.1} parent=1 // pred_check
      _
    $region11: #{tpu_custom_call.1} parent=1 // pred_check_branch
      %29 = sbr.rel (0) target = $region13
    $region12: #{tpu_custom_call.1} parent=1 // pred_region
      %s31 = ssub.s32 128, 128
      %32 = vsyncadd [#allocation7], %s31
      %s33 = sshll.u32 [#allocation6], 4
      %s34 = int_to_ptr.vmem [resolvable:$true] %s33
      %39 = dma.hbm_to_vmem [thread:$0]  %s2, 128, %s34, [#allocation7], 64, 64, 4
    $region13: #{tpu_custom_call.1} parent=1 // pred_fallthru
      _
    // Predicated region
    $region14: #{tpu_custom_call.1} parent=1 // pred_check
      _
    $region15: #{tpu_custom_call.1} parent=1 // pred_check_branch
      %41 = sbr.rel (0) target = $region17
    $region16: #{tpu_custom_call.1} parent=1 // pred_region
      %s43 = ssub.s32 1024, 1024
      %44 = vsyncadd [#allocation7], %s43
      %s45 = sshll.u32 [#allocation8], 4
      %s46 = int_to_ptr.vmem [resolvable:$true] %s45
      %51 = dma.hbm_to_vmem [thread:$0]  %s3, 1024, %s46, [#allocation7], 64, 64, 4
    $region17: #{tpu_custom_call.1} parent=1 // pred_fallthru
      _
    // Predicated region
    $region18: #{tpu_custom_call.1} parent=1 // pred_check
      _
    $region19: #{tpu_custom_call.1} parent=1 // pred_check_branch
      %53 = sbr.rel (0) target = $region21
    $region20: #{tpu_custom_call.1} parent=1 // pred_region
      %s55 = ssub.s32 1024, 1024
      %56 = vsyncadd [#allocation10], %s55
      %s57 = sshll.u32 [#allocation9], 4
      %s58 = int_to_ptr.vmem [resolvable:$true] %s57
      %63 = dma.hbm_to_vmem [thread:$0]  %s4, 1024, %s58, [#allocation10], 64, 64, 4
    $region21: #{tpu_custom_call.1} parent=1 // pred_fallthru
      _
    // Predicated region
    $region22: #{tpu_custom_call.1} parent=1 // pred_check
      _
    $region23: #{tpu_custom_call.1} parent=1 // pred_check_branch
      %65 = sbr.rel (0) target = $region25
    $region24: #{tpu_custom_call.1} parent=1 // pred_region
      _
    $region25: #{tpu_custom_call.1} parent=1 // pred_fallthru
      _
    // Predicated region
    $region26: #{tpu_custom_call.1} parent=1 // pred_check
      _
    $region27: #{tpu_custom_call.1} parent=1 // pred_check_branch
      %67 = sbr.rel (0) target = $region29
    $region28: #{tpu_custom_call.1} parent=1 // pred_region
      %68 = dma.done [#allocation4], 64
    $region29: #{tpu_custom_call.1} parent=1 // pred_fallthru
      _
    // Predicated region
    $region30: #{tpu_custom_call.1} parent=1 // pred_check
      _
    $region31: #{tpu_custom_call.1} parent=1 // pred_check_branch
      %70 = sbr.rel (0) target = $region33
    $region32: #{tpu_custom_call.1} parent=1 // pred_region
      %71 = dma.done [#allocation7], 128
    $region33: #{tpu_custom_call.1} parent=1 // pred_fallthru
      _
    // Predicated region
    $region34: #{tpu_custom_call.1} parent=1 // pred_check
      _
    $region35: #{tpu_custom_call.1} parent=1 // pred_check_branch
      %73 = sbr.rel (0) target = $region37
    $region36: #{tpu_custom_call.1} parent=1 // pred_region
      %74 = dma.done [#allocation7], 1024
    $region37: #{tpu_custom_call.1} parent=1 // pred_fallthru
      _
    // Predicated region
    $region38: #{tpu_custom_call.1} parent=1 // pred_check
      _
    $region39: #{tpu_custom_call.1} parent=1 // pred_check_branch
      %76 = sbr.rel (0) target = $region41
    $region40: #{tpu_custom_call.1} parent=1 // pred_region
      %77 = dma.done [#allocation10], 1024
    $region41: #{tpu_custom_call.1} parent=1 // pred_fallthru
      _
    %v79 = vld [vmem:[#allocation3] sm:$0xf]
    %v80 = vld [vmem:[%s5] sm:$0x1f]
    %s81 = sld [smem:[#allocation2]]
    %v82 = vlaneseq
    %v83 = vstv 0
    %v84 = vstv %s81
    %v85 = vxor.u32 %v83, %v84
    %v86 = vxor.u32 %v85, 466688986
    %v87 = vadd.s32 %v82, %v83
    %v88 = vadd.s32 %v82, %v84
    %v89 = vadd.s32 %v87, %v88
    %v90 = vshll.u32 %v88, 13
    %v91 = vshrl.u32 %v88, 19
    %v92 = vor.u32 %v90, %v91
    %v93 = vxor.u32 %v89, %v92
    %v94 = vadd.s32 %v89, %v93
    %v95 = vshll.u32 %v93, 15
    %v96 = vshrl.u32 %v93, 17
    %v97 = vor.u32 %v95, %v96
    %v98 = vxor.u32 %v94, %v97
    %v99 = vadd.s32 %v94, %v98
    %v100 = vshll.u32 %v98, 26
    %v101 = vshrl.u32 %v98, 6
    %v102 = vor.u32 %v100, %v101
    %v103 = vxor.u32 %v99, %v102
    %v104 = vadd.s32 %v99, %v103
    %v105 = vshll.u32 %v103, 6
    %v106 = vshrl.u32 %v103, 26
    %v107 = vor.u32 %v105, %v106
    %v108 = vxor.u32 %v104, %v107
    %v109 = vadd.s32 %v104, %v84
    %v110 = vadd.s32 %v108, %v86
    %v111 = vadd.s32 %v110, 1
    %v112 = vadd.s32 %v109, %v111
    %v113 = vshll.u32 %v111, 17
    %v114 = vshrl.u32 %v111, 15
    %v115 = vor.u32 %v113, %v114
    %v116 = vxor.u32 %v112, %v115
    %v117 = vadd.s32 %v112, %v116
    %v118 = vshll.u32 %v116, 29
    %v119 = vshrl.u32 %v116, 3
    %v120 = vor.u32 %v118, %v119
    %v121 = vxor.u32 %v117, %v120
    %v122 = vadd.s32 %v117, %v121
    %v123 = vshll.u32 %v121, 16
    %v124 = vshrl.u32 %v121, 16
    %v125 = vor.u32 %v123, %v124
    %v126 = vxor.u32 %v122, %v125
    %v127 = vadd.s32 %v122, %v126
    %v128 = vshll.u32 %v126, 24
    %v129 = vshrl.u32 %v126, 8
    %v130 = vor.u32 %v128, %v129
    %v131 = vxor.u32 %v127, %v130
    %v132 = vadd.s32 %v127, %v86
    %v133 = vadd.s32 %v131, %v83
    %v134 = vadd.s32 %v133, 2
    %v135 = vadd.s32 %v132, %v134
    %v136 = vshll.u32 %v134, 13
    %v137 = vshrl.u32 %v134, 19
    %v138 = vor.u32 %v136, %v137
    %v139 = vxor.u32 %v135, %v138
    %v140 = vadd.s32 %v135, %v139
    %v141 = vshll.u32 %v139, 15
    %v142 = vshrl.u32 %v139, 17
    %v143 = vor.u32 %v141, %v142
    %v144 = vxor.u32 %v140, %v143
    %v145 = vadd.s32 %v140, %v144
    %v146 = vshll.u32 %v144, 26
    %v147 = vshrl.u32 %v144, 6
    %v148 = vor.u32 %v146, %v147
    %v149 = vxor.u32 %v145, %v148
    %v150 = vadd.s32 %v145, %v149
    %v151 = vshll.u32 %v149, 6
    %v152 = vshrl.u32 %v149, 26
    %v153 = vor.u32 %v151, %v152
    %v154 = vxor.u32 %v150, %v153
    %v155 = vadd.s32 %v150, %v83
    %v156 = vadd.s32 %v154, %v84
    %v157 = vadd.s32 %v156, 3
    %v158 = vadd.s32 %v155, %v157
    %v159 = vshll.u32 %v157, 17
    %v160 = vshrl.u32 %v157, 15
    %v161 = vor.u32 %v159, %v160
    %v162 = vxor.u32 %v158, %v161
    %v163 = vadd.s32 %v158, %v162
    %v164 = vshll.u32 %v162, 29
    %v165 = vshrl.u32 %v162, 3
    %v166 = vor.u32 %v164, %v165
    %v167 = vxor.u32 %v163, %v166
    %v168 = vadd.s32 %v163, %v167
    %v169 = vshll.u32 %v167, 16
    %v170 = vshrl.u32 %v167, 16
    %v171 = vor.u32 %v169, %v170
    %v172 = vxor.u32 %v168, %v171
    %v173 = vadd.s32 %v168, %v172
    %v174 = vshll.u32 %v172, 24
    %v175 = vshrl.u32 %v172, 8
    %v176 = vor.u32 %v174, %v175
    %v177 = vxor.u32 %v173, %v176
    %v178 = vadd.s32 %v173, %v84
    %v179 = vadd.s32 %v177, %v86
    %v180 = vadd.s32 %v179, 4
    %v181 = vadd.s32 %v178, %v180
    %v182 = vshll.u32 %v180, 13
    %v183 = vshrl.u32 %v180, 19
    %v184 = vor.u32 %v182, %v183
    %v185 = vxor.u32 %v181, %v184
    %v186 = vadd.s32 %v181, %v185
    %v187 = vshll.u32 %v185, 15
    %v188 = vshrl.u32 %v185, 17
    %v189 = vor.u32 %v187, %v188
    %v190 = vxor.u32 %v186, %v189
    %v191 = vadd.s32 %v186, %v190
    %v192 = vshll.u32 %v190, 26
    %v193 = vshrl.u32 %v190, 6
    %v194 = vor.u32 %v192, %v193
    %v195 = vxor.u32 %v191, %v194
    %v196 = vadd.s32 %v191, %v195
    %v197 = vshll.u32 %v195, 6
    %v198 = vshrl.u32 %v195, 26
    %v199 = vor.u32 %v197, %v198
    %v200 = vxor.u32 %v196, %v199
    %v201 = vadd.s32 %v196, %v86
    %v202 = vadd.s32 %v200, %v83
    %v203 = vadd.s32 %v202, 5
    %v204 = vxor.u32 %v201, %v203
    %205 = set.rngseed %v204
    %v206 = vrng
    %v207 = vshrl.u32 %v206, 9
    %v208 = vor.u32 %v207, 1065353216
    %v210 = vsub.f32 %v208, 1.0
    %v211 = vmul.f32 %v210, 2.0
    %v212 = vadd.f32 %v211, -0.99999994
    %v213 = vmax.f32 %v212, -0.99999994
    %v214 = vsub.f32 0.0, %v213
    %v215 = vmul.f32 %v213, %v214
    %v216 = vadd.f32 %v215, 1.0
    %v217 = vlog2.pop %v216
    %v218 = vmul.f32 %v217, 0.6931472
    %v219 = vmul.f32 -0.5, %v215
    %v220 = vadd.f32 %v219, 1.0
    %v221 = vmul.f32 %v220, %v215
    %v222 = vand.u32 2147483647, %v215
    %vm223 = vcmp.lt.f32.partialorder %v222, 0.0004427343
    %v224 = vsel %vm223, %v221, %v218
    %v225 = vsub.f32 0.0, %v224
    %vm226 = vcmp.lt.f32.partialorder %v225, 5.0
    %v227 = vsub.f32 %v225, 2.5
    %v228 = vrsqrt.pop %v225
    %v229 = vmul.f32 %v225, %v228
    %vm230 = vcmp.eq.f32.partialorder %v225, inf
    %v231 = vsel %vm230, %v225, %v229
    %vm232 = vcmp.eq.f32.partialorder %v225, 0.0
    %v233 = vand.u32 %v225, 2147483648
    %v234 = vsel %vm232, %v233, %v231
    %v235 = vsub.f32 %v234, 3.0
    %v236 = vsel %vm226, %v227, %v235
    %v237 = vsel %vm226, 2.8102264e-08, -0.00020021426
    %v238 = vsel %vm226, 3.4327394e-07, 0.00010095056
    %v239 = vmul.f32 %v237, %v236
    %v240 = vadd.f32 %v238, %v239
    %v241 = vsel %vm226, -3.5233877e-06, 0.0013493432
    %v242 = vmul.f32 %v240, %v236
    %v243 = vadd.f32 %v241, %v242
    %v244 = vsel %vm226, -4.3915065e-06, -0.0036734284
    %v245 = vmul.f32 %v243, %v236
    %v246 = vadd.f32 %v244, %v245
    %v247 = vsel %vm226, 0.00021858087, 0.0057395077
    %v248 = vmul.f32 %v246, %v236
    %v249 = vadd.f32 %v247, %v248
    %v250 = vsel %vm226, -0.001253725, -0.0076224613
    %v251 = vmul.f32 %v249, %v236
    %v252 = vadd.f32 %v250, %v251
    %v253 = vsel %vm226, -0.0041776816, 0.0094388705
    %v254 = vmul.f32 %v252, %v236
    %v255 = vadd.f32 %v253, %v254
    %v256 = vsel %vm226, 0.24664073, 1.001674
    %v257 = vmul.f32 %v255, %v236
    %v258 = vadd.f32 %v256, %v257
    %v259 = vsel %vm226, 1.5014094, 2.8329768
    %v260 = vmul.f32 %v258, %v236
    %v261 = vadd.f32 %v259, %v260
    %v262 = vand.u32 2147483647, %v213
    %vm263 = vcmp.eq.f32.partialorder %v262, 1.0
    %v264 = vmul.f32 %v213, inf
    %v265 = vmul.f32 %v261, %v213
    %v266 = vsel %vm263, %v264, %v265
    %v267 = vmul.f32 %v266, 1.4142135
    %v268 = vlaneseq
    %v269 = vand.u32 %v268, 127
    %vm270 = vcmp.ge.s32.totalorder %v269, 12
    %v271 = vmul.f32 %v267, 0.0
    %v272 = vsel %vm270, %v271, 0.0
    %v273 = vpack.c.bf16 %v272, %v272
    %v274 = vadd.bf16 %v79, %v273
    %v275 = vld [vmem:[#allocation6] sm:$0xf]
    %v276 = vld [vmem:[#allocation6 + $0x4] sm:$0xf]
    %v277 = vlaneseq
    %v278 = vshrl.u32 %v277, 7
    %v279 = vsub.s32 0, %v278
    %v280 = vrot.slane %v80, %v279
    %v283 = vunpack.c.l.b16 %v275
    %v284 = vunpack.c.l.b16 %v276
    %v285 = vpack.c.b16 %v284, %v283
    %vm287 = vcmask 130048
    %v289 = vsel %vm287, %v274, 0
    %291 = vmatprep.subr.bf16.mxu0 0
    %292 = vmatpush1.bf16.msra.mxu0 %v285
    %293 = vmatprep.subr.bf16.mxu0 0
    %294 = vmatpush1.bf16.msra.mxu0 0
    %295 = vmatprep.subr.bf16.mxu0 0
    %296 = vmatpush1.bf16.msra.mxu0 0
    %297 = vmatprep.subr.bf16.mxu0 0
    %298 = vmatpush1.bf16.msra.mxu0 0
    %299 = vmatprep.subr.bf16.mxu0 0
    %300 = vmatpush1.bf16.msra.mxu0 0
    %301 = vmatprep.subr.bf16.mxu0 0
    %302 = vmatpush1.bf16.msra.mxu0 0
    %303 = vmatprep.subr.bf16.mxu0 0
    %304 = vmatpush1.bf16.msra.mxu0 0
    %305 = vmatprep.subr.bf16.mxu0 0
    %306 = vmatpush1.bf16.msra.mxu0 0
    %307 = vmatprep.subr.bf16.mxu0 0
    %308 = vmatpush1.bf16.msra.mxu0 0
    %309 = vmatprep.subr.bf16.mxu0 0
    %310 = vmatpush1.bf16.msra.mxu0 0
    %311 = vmatprep.subr.bf16.mxu0 0
    %312 = vmatpush1.bf16.msra.mxu0 0
    %313 = vmatprep.subr.bf16.mxu0 0
    %314 = vmatpush1.bf16.msra.mxu0 0
    %315 = vmatprep.subr.bf16.mxu0 0
    %316 = vmatpush1.bf16.msra.mxu0 0
    %317 = vmatprep.subr.bf16.mxu0 0
    %318 = vmatpush1.bf16.msra.mxu0 0
    %319 = vmatprep.subr.bf16.mxu0 0
    %320 = vmatpush1.bf16.msra.mxu0 0
    %321 = vmatprep.subr.bf16.mxu0 0
    %322 = vmatpush1.bf16.msra.mxu0 0
    %323 = vmatprep.mubr.bf16.mxu0 0
    %324 = vmatmul.mubr.bf16.gmra.mrb[0].mxu0 %v289
    %v325 = vpop.f32.mrb[0].mxu0
    %v326 = vadd.f32 %v280, %v325
    %v327 = vpop.f32.mrb[0].mxu0
    %v328 = vpop.f32.mrb[0].mxu0
    %v329 = vpop.f32.mrb[0].mxu0
    %330 = vdwg.mxu0
    %v331 = vmax.f32 %v326, 0.0
    %v332 = vpack.c.bf16 %v331, %v331
    %v333 = vld [vmem:[#allocation8] sm:$0xf]
    %v334 = vld [vmem:[#allocation8 + $0x4] sm:$0xf]
    %v335 = vld [vmem:[#allocation8 + $0x8] sm:$0xf]
    %v336 = vld [vmem:[#allocation8 + $0xc] sm:$0xf]
    %v337 = vld [vmem:[#allocation8 + $0x10] sm:$0xf]
    %v338 = vld [vmem:[#allocation8 + $0x14] sm:$0xf]
    %v339 = vld [vmem:[#allocation8 + $0x18] sm:$0xf]
    %v340 = vld [vmem:[#allocation8 + $0x1c] sm:$0xf]
    %v341 = vld [vmem:[#allocation8 + $0x20] sm:$0xf]
    %v342 = vld [vmem:[#allocation8 + $0x24] sm:$0xf]
    %v343 = vld [vmem:[#allocation8 + $0x28] sm:$0xf]
    %v344 = vld [vmem:[#allocation8 + $0x2c] sm:$0xf]
    %v345 = vld [vmem:[#allocation8 + $0x30] sm:$0xf]
    %v346 = vld [vmem:[#allocation8 + $0x34] sm:$0xf]
    %v347 = vld [vmem:[#allocation8 + $0x38] sm:$0xf]
    %v348 = vld [vmem:[#allocation8 + $0x3c] sm:$0xf]
    %v349 = vlaneseq
    %v350 = vshrl.u32 %v349, 7
    %v351 = vsub.s32 1, %v350
    %v352 = vrot.slane %v80, %v351
    %v369 = vunpack.c.l.b16 %v333
    %v370 = vunpack.c.l.b16 %v334
    %v371 = vunpack.c.l.b16 %v335
    %v372 = vunpack.c.l.b16 %v336
    %v373 = vunpack.c.l.b16 %v337
    %v374 = vunpack.c.l.b16 %v338
    %v375 = vunpack.c.l.b16 %v339
    %v376 = vunpack.c.l.b16 %v340
    %v377 = vunpack.c.l.b16 %v341
    %v378 = vunpack.c.l.b16 %v342
    %v379 = vunpack.c.l.b16 %v343
    %v380 = vunpack.c.l.b16 %v344
    %v381 = vunpack.c.l.b16 %v345
    %v382 = vunpack.c.l.b16 %v346
    %v383 = vunpack.c.l.b16 %v347
    %v384 = vunpack.c.l.b16 %v348
    %v385 = vpack.c.b16 %v370, %v369
    %v386 = vpack.c.b16 %v372, %v371
    %v387 = vpack.c.b16 %v374, %v373
    %v388 = vpack.c.b16 %v376, %v375
    %v389 = vpack.c.b16 %v378, %v377
    %v390 = vpack.c.b16 %v380, %v379
    %v391 = vpack.c.b16 %v382, %v381
    %v392 = vpack.c.b16 %v384, %v383
    %401 = vmatprep.subr.bf16.mxu0 0
    %402 = vmatpush1.bf16.msra.mxu0 %v385
    %403 = vmatprep.subr.bf16.mxu0 0
    %404 = vmatpush1.bf16.msra.mxu0 %v386
    %405 = vmatprep.subr.bf16.mxu0 0
    %406 = vmatpush1.bf16.msra.mxu0 %v387
    %407 = vmatprep.subr.bf16.mxu0 0
    %408 = vmatpush1.bf16.msra.mxu0 %v388
    %409 = vmatprep.subr.bf16.mxu0 0
    %410 = vmatpush1.bf16.msra.mxu0 %v389
    %411 = vmatprep.subr.bf16.mxu0 0
    %412 = vmatpush1.bf16.msra.mxu0 %v390
    %413 = vmatprep.subr.bf16.mxu0 0
    %414 = vmatpush1.bf16.msra.mxu0 %v391
    %415 = vmatprep.subr.bf16.mxu0 0
    %416 = vmatpush1.bf16.msra.mxu0 %v392
    %417 = vmatprep.subr.bf16.mxu0 0
    %418 = vmatpush1.bf16.msra.mxu0 0
    %419 = vmatprep.subr.bf16.mxu0 0
    %420 = vmatpush1.bf16.msra.mxu0 0
    %421 = vmatprep.subr.bf16.mxu0 0
    %422 = vmatpush1.bf16.msra.mxu0 0
    %423 = vmatprep.subr.bf16.mxu0 0
    %424 = vmatpush1.bf16.msra.mxu0 0
    %425 = vmatprep.subr.bf16.mxu0 0
    %426 = vmatpush1.bf16.msra.mxu0 0
    %427 = vmatprep.subr.bf16.mxu0 0
    %428 = vmatpush1.bf16.msra.mxu0 0
    %429 = vmatprep.subr.bf16.mxu0 0
    %430 = vmatpush1.bf16.msra.mxu0 0
    %431 = vmatprep.subr.bf16.mxu0 0
    %432 = vmatpush1.bf16.msra.mxu0 0
    %433 = vmatprep.mubr.bf16.mxu0 0
    %434 = vmatmul.mubr.bf16.gmra.mrb[0].mxu0 %v332
    %v435 = vpop.f32.mrb[0].mxu0
    %v436 = vadd.f32 %v352, %v435
    %v437 = vpop.f32.mrb[0].mxu0
    %v438 = vpop.f32.mrb[0].mxu0
    %v439 = vpop.f32.mrb[0].mxu0
    %440 = vdwg.mxu0
    %v441 = vmax.f32 %v436, 0.0
    %v442 = vpack.c.bf16 %v441, %v441
    %v443 = vld [vmem:[#allocation9] sm:$0xf]
    %v444 = vld [vmem:[#allocation9 + $0x4] sm:$0xf]
    %v445 = vld [vmem:[#allocation9 + $0x8] sm:$0xf]
    %v446 = vld [vmem:[#allocation9 + $0xc] sm:$0xf]
    %v447 = vld [vmem:[#allocation9 + $0x10] sm:$0xf]
    %v448 = vld [vmem:[#allocation9 + $0x14] sm:$0xf]
    %v449 = vld [vmem:[#allocation9 + $0x18] sm:$0xf]
    %v450 = vld [vmem:[#allocation9 + $0x1c] sm:$0xf]
    %v451 = vld [vmem:[#allocation9 + $0x20] sm:$0xf]
    %v452 = vld [vmem:[#allocation9 + $0x24] sm:$0xf]
    %v453 = vld [vmem:[#allocation9 + $0x28] sm:$0xf]
    %v454 = vld [vmem:[#allocation9 + $0x2c] sm:$0xf]
    %v455 = vld [vmem:[#allocation9 + $0x30] sm:$0xf]
    %v456 = vld [vmem:[#allocation9 + $0x34] sm:$0xf]
    %v457 = vld [vmem:[#allocation9 + $0x38] sm:$0xf]
    %v458 = vld [vmem:[#allocation9 + $0x3c] sm:$0xf]
    %v459 = vlaneseq
    %v460 = vshrl.u32 %v459, 7
    %v461 = vsub.s32 2, %v460
    %v462 = vrot.slane %v80, %v461
    %v479 = vunpack.c.l.b16 %v443
    %v480 = vunpack.c.l.b16 %v444
    %v481 = vunpack.c.l.b16 %v445
    %v482 = vunpack.c.l.b16 %v446
    %v483 = vunpack.c.l.b16 %v447
    %v484 = vunpack.c.l.b16 %v448
    %v485 = vunpack.c.l.b16 %v449
    %v486 = vunpack.c.l.b16 %v450
    %v487 = vunpack.c.l.b16 %v451
    %v488 = vunpack.c.l.b16 %v452
    %v489 = vunpack.c.l.b16 %v453
    %v490 = vunpack.c.l.b16 %v454
    %v491 = vunpack.c.l.b16 %v455
    %v492 = vunpack.c.l.b16 %v456
    %v493 = vunpack.c.l.b16 %v457
    %v494 = vunpack.c.l.b16 %v458
    %v495 = vpack.c.b16 %v480, %v479
    %v496 = vpack.c.b16 %v482, %v481
    %v497 = vpack.c.b16 %v484, %v483
    %v498 = vpack.c.b16 %v486, %v485
    %v499 = vpack.c.b16 %v488, %v487
    %v500 = vpack.c.b16 %v490, %v489
    %v501 = vpack.c.b16 %v492, %v491
    %v502 = vpack.c.b16 %v494, %v493
    %511 = vmatprep.subr.bf16.mxu0 0
    %512 = vmatpush1.bf16.msra.mxu0 %v495
    %513 = vmatprep.subr.bf16.mxu0 0
    %514 = vmatpush1.bf16.msra.mxu0 %v496
    %515 = vmatprep.subr.bf16.mxu0 0
    %516 = vmatpush1.bf16.msra.mxu0 %v497
    %517 = vmatprep.subr.bf16.mxu0 0
    %518 = vmatpush1.bf16.msra.mxu0 %v498
    %519 = vmatprep.subr.bf16.mxu0 0
    %520 = vmatpush1.bf16.msra.mxu0 %v499
    %521 = vmatprep.subr.bf16.mxu0 0
    %522 = vmatpush1.bf16.msra.mxu0 %v500
    %523 = vmatprep.subr.bf16.mxu0 0
    %524 = vmatpush1.bf16.msra.mxu0 %v501
    %525 = vmatprep.subr.bf16.mxu0 0
    %526 = vmatpush1.bf16.msra.mxu0 %v502
    %527 = vmatprep.subr.bf16.mxu0 0
    %528 = vmatpush1.bf16.msra.mxu0 0
    %529 = vmatprep.subr.bf16.mxu0 0
    %530 = vmatpush1.bf16.msra.mxu0 0
    %531 = vmatprep.subr.bf16.mxu0 0
    %532 = vmatpush1.bf16.msra.mxu0 0
    %533 = vmatprep.subr.bf16.mxu0 0
    %534 = vmatpush1.bf16.msra.mxu0 0
    %535 = vmatprep.subr.bf16.mxu0 0
    %536 = vmatpush1.bf16.msra.mxu0 0
    %537 = vmatprep.subr.bf16.mxu0 0
    %538 = vmatpush1.bf16.msra.mxu0 0
    %539 = vmatprep.subr.bf16.mxu0 0
    %540 = vmatpush1.bf16.msra.mxu0 0
    %541 = vmatprep.subr.bf16.mxu0 0
    %542 = vmatpush1.bf16.msra.mxu0 0
    %543 = vmatprep.mubr.bf16.mxu0 0
    %544 = vmatmul.mubr.bf16.gmra.mrb[0].mxu0 %v442
    %v545 = vpop.f32.mrb[0].mxu0
    %v546 = vadd.f32 %v462, %v545
    %v547 = vpop.f32.mrb[0].mxu0
    %v548 = vpop.f32.mrb[0].mxu0
    %v549 = vpop.f32.mrb[0].mxu0
    %550 = vdwg.mxu0
    %v551 = vtanh.pop %v546
    %552 = vst [vmem:[#allocation11] sm:$0xff] %v551
    // Predicated region
    $region42: #{tpu_custom_call.1} parent=1 // pred_check
      _
    $region43: #{tpu_custom_call.1} parent=1 // pred_check_branch
      %554 = sbr.rel (0) target = $region45
    $region44: #{tpu_custom_call.1} parent=1 // pred_region
      %s556 = ssub.s32 128, 128
      %557 = vsyncadd [#allocation5], %s556
      %s559 = sshll.u32 [#allocation11], 4
      %s560 = int_to_ptr.vmem [resolvable:$true] %s559
      %562 = dma.vmem_to_hbm [thread:$0]  %s560, 128, %s6, [#allocation5]
    $region45: #{tpu_custom_call.1} parent=1 // pred_fallthru
      _
    // Predicated region
    $region46: #{tpu_custom_call.1} parent=1 // pred_check
      _
    $region47: #{tpu_custom_call.1} parent=1 // pred_check_branch
      %564 = sbr.rel (0) target = $region49
    $region48: #{tpu_custom_call.1} parent=1 // pred_region
      %565 = dma.done [#allocation5], 128
    $region49: #{tpu_custom_call.1} parent=1 // pred_fallthru
      _
    %566 = vsyncpa [#allocation4], 1
    %567 = vsyncpa [#allocation7], 1
    %568 = vsyncpa [#allocation10], 1
    %569 = vsyncpa [#allocation5], 1

// kernel: tpu_custom_call.1
$region0: #{tpu_custom_call.1}
  #allocation0 [shape = 'u32[]', space=smem, size = 0x4, offset = 0x4, fixed_abs, tag = 'smem constant byte address 0x4 - core index']
  #allocation1 [shape = 'u32[144,128]{1,0:T(1,128)}', space=vmem, size = 0x12000, scoped, tag = 'internal scratch']
  #allocation2 [shape = 's32[1]{0:T(128)S(6)}', space=smem, size = 0x200, scoped, tag = 'scoped memory for tpu_custom_call.1']
  %s0 = inlined_call_operand.<no memory space> [shape: s32[1], index: 0, kind: input, shape index: {}]
  %s1 = inlined_call_operand.hbm [shape: bf16[8,16], index: 1, kind: input, shape index: {}]
  %s2 = inlined_call_operand.hbm [shape: bf16[16,128], index: 2, kind: input, shape index: {}]
  %s3 = inlined_call_operand.hbm [shape: bf16[128,128], index: 3, kind: input, shape index: {}]
  %s4 = inlined_call_operand.hbm [shape: bf16[128,128], index: 4, kind: input, shape index: {}]
  %s5 = inlined_call_operand.vmem [shape: f32[5,128], index: 5, kind: input, shape index: {}]
  %s6 = inlined_call_operand.hbm [shape: f32[8,128], index: 6, kind: output, shape index: {}]
  %s7 = sld [smem:[#allocation0]]
  $region50: #{tpu_custom_call.1} parent=0
    _
  %s9 = ssub.s32 1, %s7
  %s10 = scalar_select 0, %s9, %s7
  %11 = sst [smem:[#allocation2]] %s0
  $region1: #{tpu_custom_call.1} parent=0
    #allocation3 [shape = 'u8[2048]{0}', space=vmem, size = 0x800, scoped, tag = 'input window, operand 1, single buffered']
    #allocation4 [shape = 's32[1]{0}', space=sflag, size = 0x4, scoped, tag = 'scoped memory for tpu_custom_call.1']
    #allocation5 [shape = 's32[1]{0}', space=sflag, size = 0x4, scoped, tag = 'scoped memory for tpu_custom_call.1']
    #allocation6 [shape = 'u8[4096]{0}', space=vmem, size = 0x1000, scoped, tag = 'input window, operand 2, single buffered']
    #allocation7 [shape = 's32[1]{0}', space=sflag, size = 0x4, scoped, tag = 'scoped memory for tpu_custom_call.1']
    #allocation8 [shape = 'u8[32768]{0}', space=vmem, size = 0x8000, scoped, tag = 'input window, operand 3, single buffered']
    #allocation9 [shape = 'u8[32768]{0}', space=vmem, size = 0x8000, scoped, tag = 'input window, operand 4, single buffered']
    #allocation10 [shape = 's32[1]{0}', space=sflag, size = 0x4, scoped, tag = 'scoped memory for tpu_custom_call.1']
    #allocation11 [shape = 'u8[4096]{0}', space=vmem, size = 0x1000, scoped, tag = 'output window, operand 0, single buffered']
    %12 = vsyncpa [#allocation4], 0
    %13 = vsyncpa [#allocation7], 0
    %14 = vsyncpa [#allocation10], 0
    %15 = vsyncpa [#allocation5], 0
    // Predicated region
    $region2: #{tpu_custom_call.1} parent=1 // pred_check
      _
    $region3: #{tpu_custom_call.1} parent=1 // pred_check_branch
      %17 = sbr.rel (0) target = $region5
    $region4: #{tpu_custom_call.1} parent=1 // pred_region
      _
    $region5: #{tpu_custom_call.1} parent=1 // pred_fallthru
      _
    // Predicated region
    $region6: #{tpu_custom_call.1} parent=1 // pred_check
      _
    $region7: #{tpu_custom_call.1} parent=1 // pred_check_branch
      %19 = sbr.rel (0) target = $region9
    $region8: #{tpu_custom_call.1} parent=1 // pred_region
      %s21 = ssub.s32 64, 64
      %22 = vsyncadd [#allocation4], %s21
      %s24 = sshll.u32 [#allocation3], 4
      %s25 = int_to_ptr.vmem [resolvable:$true] %s24
      %27 = dma.hbm_to_vmem [thread:$0]  %s1, 64, %s25, [#allocation4]
    $region9: #{tpu_custom_call.1} parent=1 // pred_fallthru
      _
    // Predicated region
    $region10: #{tpu_custom_call.1} parent=1 // pred_check
      _
    $region11: #{tpu_custom_call.1} parent=1 // pred_check_branch
      %29 = sbr.rel (0) target = $region13
    $region12: #{tpu_custom_call.1} parent=1 // pred_region
      %s31 = ssub.s32 128, 128
      %32 = vsyncadd [#allocation7], %s31
      %s33 = sshll.u32 [#allocation6], 4
      %s34 = int_to_ptr.vmem [resolvable:$true] %s33
      %39 = dma.hbm_to_vmem [thread:$0]  %s2, 128, %s34, [#allocation7], 64, 64, 4
    $region13: #{tpu_custom_call.1} parent=1 // pred_fallthru
      _
    // Predicated region
    $region14: #{tpu_custom_call.1} parent=1 // pred_check
      _
    $region15: #{tpu_custom_call.1} parent=1 // pred_check_branch
      %41 = sbr.rel (0) target = $region17
    $region16: #{tpu_custom_call.1} parent=1 // pred_region
      %s43 = ssub.s32 1024, 1024
      %44 = vsyncadd [#allocation7], %s43
      %s45 = sshll.u32 [#allocation8], 4
      %s46 = int_to_ptr.vmem [resolvable:$true] %s45
      %51 = dma.hbm_to_vmem [thread:$0]  %s3, 1024, %s46, [#allocation7], 64, 64, 4
    $region17: #{tpu_custom_call.1} parent=1 // pred_fallthru
      _
    // Predicated region
    $region18: #{tpu_custom_call.1} parent=1 // pred_check
      _
    $region19: #{tpu_custom_call.1} parent=1 // pred_check_branch
      %53 = sbr.rel (0) target = $region21
    $region20: #{tpu_custom_call.1} parent=1 // pred_region
      %s55 = ssub.s32 1024, 1024
      %56 = vsyncadd [#allocation10], %s55
      %s57 = sshll.u32 [#allocation9], 4
      %s58 = int_to_ptr.vmem [resolvable:$true] %s57
      %63 = dma.hbm_to_vmem [thread:$0]  %s4, 1024, %s58, [#allocation10], 64, 64, 4
    $region21: #{tpu_custom_call.1} parent=1 // pred_fallthru
      _
    // Predicated region
    $region22: #{tpu_custom_call.1} parent=1 // pred_check
      _
    $region23: #{tpu_custom_call.1} parent=1 // pred_check_branch
      %65 = sbr.rel (0) target = $region25
    $region24: #{tpu_custom_call.1} parent=1 // pred_region
      _
    $region25: #{tpu_custom_call.1} parent=1 // pred_fallthru
      _
    // Predicated region
    $region26: #{tpu_custom_call.1} parent=1 // pred_check
      _
    $region27: #{tpu_custom_call.1} parent=1 // pred_check_branch
      %67 = sbr.rel (0) target = $region29
    $region28: #{tpu_custom_call.1} parent=1 // pred_region
      %68 = dma.done [#allocation4], 64
    $region29: #{tpu_custom_call.1} parent=1 // pred_fallthru
      _
    // Predicated region
    $region30: #{tpu_custom_call.1} parent=1 // pred_check
      _
    $region31: #{tpu_custom_call.1} parent=1 // pred_check_branch
      %70 = sbr.rel (0) target = $region33
    $region32: #{tpu_custom_call.1} parent=1 // pred_region
      %71 = dma.done [#allocation7], 128
    $region33: #{tpu_custom_call.1} parent=1 // pred_fallthru
      _
    // Predicated region
    $region34: #{tpu_custom_call.1} parent=1 // pred_check
      _
    $region35: #{tpu_custom_call.1} parent=1 // pred_check_branch
      %73 = sbr.rel (0) target = $region37
    $region36: #{tpu_custom_call.1} parent=1 // pred_region
      %74 = dma.done [#allocation7], 1024
    $region37: #{tpu_custom_call.1} parent=1 // pred_fallthru
      _
    // Predicated region
    $region38: #{tpu_custom_call.1} parent=1 // pred_check
      _
    $region39: #{tpu_custom_call.1} parent=1 // pred_check_branch
      %76 = sbr.rel (0) target = $region41
    $region40: #{tpu_custom_call.1} parent=1 // pred_region
      %77 = dma.done [#allocation10], 1024
    $region41: #{tpu_custom_call.1} parent=1 // pred_fallthru
      _
    %v79 = vld [vmem:[#allocation3] sm:$0xf]
    %v80 = vld [vmem:[%s5] sm:$0x1f]
    %s81 = sld [smem:[#allocation2]]
    %v82 = vlaneseq
    %v83 = vstv 0
    %v84 = vstv %s81
    %v85 = vxor.u32 %v83, %v84
    %v86 = vxor.u32 %v85, 466688986
    %v87 = vadd.s32 %v82, %v83
    %v88 = vadd.s32 %v82, %v84
    %v89 = vadd.s32 %v87, %v88
    %v90 = vshll.u32 %v88, 13
    %v91 = vshrl.u32 %v88, 19
    %v92 = vor.u32 %v90, %v91
    %v93 = vxor.u32 %v89, %v92
    %v94 = vadd.s32 %v89, %v93
    %v95 = vshll.u32 %v93, 15
    %v96 = vshrl.u32 %v93, 17
    %v97 = vor.u32 %v95, %v96
    %v98 = vxor.u32 %v94, %v97
    %v99 = vadd.s32 %v94, %v98
    %v100 = vshll.u32 %v98, 26
    %v101 = vshrl.u32 %v98, 6
    %v102 = vor.u32 %v100, %v101
    %v103 = vxor.u32 %v99, %v102
    %v104 = vadd.s32 %v99, %v103
    %v105 = vshll.u32 %v103, 6
    %v106 = vshrl.u32 %v103, 26
    %v107 = vor.u32 %v105, %v106
    %v108 = vxor.u32 %v104, %v107
    %v109 = vadd.s32 %v104, %v84
    %v110 = vadd.s32 %v108, %v86
    %v111 = vadd.s32 %v110, 1
    %v112 = vadd.s32 %v109, %v111
    %v113 = vshll.u32 %v111, 17
    %v114 = vshrl.u32 %v111, 15
    %v115 = vor.u32 %v113, %v114
    %v116 = vxor.u32 %v112, %v115
    %v117 = vadd.s32 %v112, %v116
    %v118 = vshll.u32 %v116, 29
    %v119 = vshrl.u32 %v116, 3
    %v120 = vor.u32 %v118, %v119
    %v121 = vxor.u32 %v117, %v120
    %v122 = vadd.s32 %v117, %v121
    %v123 = vshll.u32 %v121, 16
    %v124 = vshrl.u32 %v121, 16
    %v125 = vor.u32 %v123, %v124
    %v126 = vxor.u32 %v122, %v125
    %v127 = vadd.s32 %v122, %v126
    %v128 = vshll.u32 %v126, 24
    %v129 = vshrl.u32 %v126, 8
    %v130 = vor.u32 %v128, %v129
    %v131 = vxor.u32 %v127, %v130
    %v132 = vadd.s32 %v127, %v86
    %v133 = vadd.s32 %v131, %v83
    %v134 = vadd.s32 %v133, 2
    %v135 = vadd.s32 %v132, %v134
    %v136 = vshll.u32 %v134, 13
    %v137 = vshrl.u32 %v134, 19
    %v138 = vor.u32 %v136, %v137
    %v139 = vxor.u32 %v135, %v138
    %v140 = vadd.s32 %v135, %v139
    %v141 = vshll.u32 %v139, 15
    %v142 = vshrl.u32 %v139, 17
    %v143 = vor.u32 %v141, %v142
    %v144 = vxor.u32 %v140, %v143
    %v145 = vadd.s32 %v140, %v144
    %v146 = vshll.u32 %v144, 26
    %v147 = vshrl.u32 %v144, 6
    %v148 = vor.u32 %v146, %v147
    %v149 = vxor.u32 %v145, %v148
    %v150 = vadd.s32 %v145, %v149
    %v151 = vshll.u32 %v149, 6
    %v152 = vshrl.u32 %v149, 26
    %v153 = vor.u32 %v151, %v152
    %v154 = vxor.u32 %v150, %v153
    %v155 = vadd.s32 %v150, %v83
    %v156 = vadd.s32 %v154, %v84
    %v157 = vadd.s32 %v156, 3
    %v158 = vadd.s32 %v155, %v157
    %v159 = vshll.u32 %v157, 17
    %v160 = vshrl.u32 %v157, 15
    %v161 = vor.u32 %v159, %v160
    %v162 = vxor.u32 %v158, %v161
    %v163 = vadd.s32 %v158, %v162
    %v164 = vshll.u32 %v162, 29
    %v165 = vshrl.u32 %v162, 3
    %v166 = vor.u32 %v164, %v165
    %v167 = vxor.u32 %v163, %v166
    %v168 = vadd.s32 %v163, %v167
    %v169 = vshll.u32 %v167, 16
    %v170 = vshrl.u32 %v167, 16
    %v171 = vor.u32 %v169, %v170
    %v172 = vxor.u32 %v168, %v171
    %v173 = vadd.s32 %v168, %v172
    %v174 = vshll.u32 %v172, 24
    %v175 = vshrl.u32 %v172, 8
    %v176 = vor.u32 %v174, %v175
    %v177 = vxor.u32 %v173, %v176
    %v178 = vadd.s32 %v173, %v84
    %v179 = vadd.s32 %v177, %v86
    %v180 = vadd.s32 %v179, 4
    %v181 = vadd.s32 %v178, %v180
    %v182 = vshll.u32 %v180, 13
    %v183 = vshrl.u32 %v180, 19
    %v184 = vor.u32 %v182, %v183
    %v185 = vxor.u32 %v181, %v184
    %v186 = vadd.s32 %v181, %v185
    %v187 = vshll.u32 %v185, 15
    %v188 = vshrl.u32 %v185, 17
    %v189 = vor.u32 %v187, %v188
    %v190 = vxor.u32 %v186, %v189
    %v191 = vadd.s32 %v186, %v190
    %v192 = vshll.u32 %v190, 26
    %v193 = vshrl.u32 %v190, 6
    %v194 = vor.u32 %v192, %v193
    %v195 = vxor.u32 %v191, %v194
    %v196 = vadd.s32 %v191, %v195
    %v197 = vshll.u32 %v195, 6
    %v198 = vshrl.u32 %v195, 26
    %v199 = vor.u32 %v197, %v198
    %v200 = vxor.u32 %v196, %v199
    %v201 = vadd.s32 %v196, %v86
    %v202 = vadd.s32 %v200, %v83
    %v203 = vadd.s32 %v202, 5
    %v204 = vxor.u32 %v201, %v203
    %205 = set.rngseed %v204
    %v206 = vrng
    %v207 = vshrl.u32 %v206, 9
    %v208 = vor.u32 %v207, 1065353216
    %v210 = vsub.f32 %v208, 1.0
    %v211 = vmul.f32 %v210, 2.0
    %v212 = vadd.f32 %v211, -0.99999994
    %v213 = vmax.f32 %v212, -0.99999994
    %v214 = vsub.f32 0.0, %v213
    %v215 = vmul.f32 %v213, %v214
    %v216 = vadd.f32 %v215, 1.0
    %v217 = vlog2.pop %v216
    %v218 = vmul.f32 %v217, 0.6931472
    %v219 = vmul.f32 -0.5, %v215
    %v220 = vadd.f32 %v219, 1.0
    %v221 = vmul.f32 %v220, %v215
    %v222 = vand.u32 2147483647, %v215
    %vm223 = vcmp.lt.f32.partialorder %v222, 0.0004427343
    %v224 = vsel %vm223, %v221, %v218
    %v225 = vsub.f32 0.0, %v224
    %vm226 = vcmp.lt.f32.partialorder %v225, 5.0
    %v227 = vsub.f32 %v225, 2.5
    %v228 = vrsqrt.pop %v225
    %v229 = vmul.f32 %v225, %v228
    %vm230 = vcmp.eq.f32.partialorder %v225, inf
    %v231 = vsel %vm230, %v225, %v229
    %vm232 = vcmp.eq.f32.partialorder %v225, 0.0
    %v233 = vand.u32 %v225, 2147483648
    %v234 = vsel %vm232, %v233, %v231
    %v235 = vsub.f32 %v234, 3.0
    %v236 = vsel %vm226, %v227, %v235
    %v237 = vsel %vm226, 2.8102264e-08, -0.00020021426
    %v238 = vsel %vm226, 3.4327394e-07, 0.00010095056
    %v239 = vmul.f32 %v237, %v236
    %v240 = vadd.f32 %v238, %v239
    %v241 = vsel %vm226, -3.5233877e-06, 0.0013493432
    %v242 = vmul.f32 %v240, %v236
    %v243 = vadd.f32 %v241, %v242
    %v244 = vsel %vm226, -4.3915065e-06, -0.0036734284
    %v245 = vmul.f32 %v243, %v236
    %v246 = vadd.f32 %v244, %v245
    %v247 = vsel %vm226, 0.00021858087, 0.0057395077
    %v248 = vmul.f32 %v246, %v236
    %v249 = vadd.f32 %v247, %v248
    %v250 = vsel %vm226, -0.001253725, -0.0076224613
    %v251 = vmul.f32 %v249, %v236
    %v252 = vadd.f32 %v250, %v251
    %v253 = vsel %vm226, -0.0041776816, 0.0094388705
    %v254 = vmul.f32 %v252, %v236
    %v255 = vadd.f32 %v253, %v254
    %v256 = vsel %vm226, 0.24664073, 1.001674
    %v257 = vmul.f32 %v255, %v236
    %v258 = vadd.f32 %v256, %v257
    %v259 = vsel %vm226, 1.5014094, 2.8329768
    %v260 = vmul.f32 %v258, %v236
    %v261 = vadd.f32 %v259, %v260
    %v262 = vand.u32 2147483647, %v213
    %vm263 = vcmp.eq.f32.partialorder %v262, 1.0
    %v264 = vmul.f32 %v213, inf
    %v265 = vmul.f32 %v261, %v213
    %v266 = vsel %vm263, %v264, %v265
    %v267 = vmul.f32 %v266, 1.4142135
    %v268 = vlaneseq
    %v269 = vand.u32 %v268, 127
    %vm270 = vcmp.ge.s32.totalorder %v269, 12
    %v271 = vmul.f32 %v267, 0.0
    %v272 = vsel %vm270, %v271, 0.0
    %v273 = vpack.c.bf16 %v272, %v272
    %v274 = vadd.bf16 %v79, %v273
    %v275 = vld [vmem:[#allocation6] sm:$0xf]
    %v276 = vld [vmem:[#allocation6 + $0x4] sm:$0xf]
    %v277 = vlaneseq
    %v278 = vshrl.u32 %v277, 7
    %v279 = vsub.s32 0, %v278
    %v280 = vrot.slane %v80, %v279
    %v283 = vunpack.c.l.b16 %v275
    %v284 = vunpack.c.l.b16 %v276
    %v285 = vpack.c.b16 %v284, %v283
    %vm287 = vcmask 130048
    %v289 = vsel %vm287, %v274, 0
    %291 = vmatprep.subr.bf16.mxu0 0
    %292 = vmatpush1.bf16.msra.mxu0 %v285
    %293 = vmatprep.subr.bf16.mxu0 0
    %294 = vmatpush1.bf16.msra.mxu0 0
    %295 = vmatprep.subr.bf16.mxu0 0
    %296 = vmatpush1.bf16.msra.mxu0 0
    %297 = vmatprep.subr.bf16.mxu0 0
    %298 = vmatpush1.bf16.msra.mxu0 0
    %299 = vmatprep.subr.bf16.mxu0 0
    %300 = vmatpush1.bf16.msra.mxu0 0
    %301 = vmatprep.subr.bf16.mxu0 0
    %302 = vmatpush1.bf16.msra.mxu0 0
    %303 = vmatprep.subr.bf16.mxu0 0
    %304 = vmatpush1.bf16.msra.mxu0 0
    %305 = vmatprep.subr.bf16.mxu0 0
    %306 = vmatpush1.bf16.msra.mxu0 0
    %307 = vmatprep.subr.bf16.mxu0 0
    %308 = vmatpush1.bf16.msra.mxu0 0
    %309 = vmatprep.subr.bf16.mxu0 0
    %310 = vmatpush1.bf16.msra.mxu0 0
    %311 = vmatprep.subr.bf16.mxu0 0
    %312 = vmatpush1.bf16.msra.mxu0 0
    %313 = vmatprep.subr.bf16.mxu0 0
    %314 = vmatpush1.bf16.msra.mxu0 0
    %315 = vmatprep.subr.bf16.mxu0 0
    %316 = vmatpush1.bf16.msra.mxu0 0
    %317 = vmatprep.subr.bf16.mxu0 0
    %318 = vmatpush1.bf16.msra.mxu0 0
    %319 = vmatprep.subr.bf16.mxu0 0
    %320 = vmatpush1.bf16.msra.mxu0 0
    %321 = vmatprep.subr.bf16.mxu0 0
    %322 = vmatpush1.bf16.msra.mxu0 0
    %323 = vmatprep.mubr.bf16.mxu0 0
    %324 = vmatmul.mubr.bf16.gmra.mrb[0].mxu0 %v289
    %v325 = vpop.f32.mrb[0].mxu0
    %v326 = vadd.f32 %v280, %v325
    %v327 = vpop.f32.mrb[0].mxu0
    %v328 = vpop.f32.mrb[0].mxu0
    %v329 = vpop.f32.mrb[0].mxu0
    %330 = vdwg.mxu0
    %v331 = vmax.f32 %v326, 0.0
    %v332 = vpack.c.bf16 %v331, %v331
    %v333 = vld [vmem:[#allocation8] sm:$0xf]
    %v334 = vld [vmem:[#allocation8 + $0x4] sm:$0xf]
    %v335 = vld [vmem:[#allocation8 + $0x8] sm:$0xf]
    %v336 = vld [vmem:[#allocation8 + $0xc] sm:$0xf]
    %v337 = vld [vmem:[#allocation8 + $0x10] sm:$0xf]
    %v338 = vld [vmem:[#allocation8 + $0x14] sm:$0xf]
    %v339 = vld [vmem:[#allocation8 + $0x18] sm:$0xf]
    %v340 = vld [vmem:[#allocation8 + $0x1c] sm:$0xf]
    %v341 = vld [vmem:[#allocation8 + $0x20] sm:$0xf]
    %v342 = vld [vmem:[#allocation8 + $0x24] sm:$0xf]
    %v343 = vld [vmem:[#allocation8 + $0x28] sm:$0xf]
    %v344 = vld [vmem:[#allocation8 + $0x2c] sm:$0xf]
    %v345 = vld [vmem:[#allocation8 + $0x30] sm:$0xf]
    %v346 = vld [vmem:[#allocation8 + $0x34] sm:$0xf]
    %v347 = vld [vmem:[#allocation8 + $0x38] sm:$0xf]
    %v348 = vld [vmem:[#allocation8 + $0x3c] sm:$0xf]
    %v349 = vlaneseq
    %v350 = vshrl.u32 %v349, 7
    %v351 = vsub.s32 1, %v350
    %v352 = vrot.slane %v80, %v351
    %v369 = vunpack.c.l.b16 %v333
    %v370 = vunpack.c.l.b16 %v334
    %v371 = vunpack.c.l.b16 %v335
    %v372 = vunpack.c.l.b16 %v336
    %v373 = vunpack.c.l.b16 %v337
    %v374 = vunpack.c.l.b16 %v338
    %v375 = vunpack.c.l.b16 %v339
    %v376 = vunpack.c.l.b16 %v340
    %v377 = vunpack.c.l.b16 %v341
    %v378 = vunpack.c.l.b16 %v342
    %v379 = vunpack.c.l.b16 %v343
    %v380 = vunpack.c.l.b16 %v344
    %v381 = vunpack.c.l.b16 %v345
    %v382 = vunpack.c.l.b16 %v346
    %v383 = vunpack.c.l.b16 %v347
    %v384 = vunpack.c.l.b16 %v348
    %v385 = vpack.c.b16 %v370, %v369
    %v386 = vpack.c.b16 %v372, %v371
    %v387 = vpack.c.b16 %v374, %v373
    %v388 = vpack.c.b16 %v376, %v375
    %v389 = vpack.c.b16 %v378, %v377
    %v390 = vpack.c.b16 %v380, %v379
    %v391 = vpack.c.b16 %v382, %v381
    %v392 = vpack.c.b16 %v384, %v383
    %401 = vmatprep.subr.bf16.mxu0 0
    %402 = vmatpush1.bf16.msra.mxu0 %v385
    %403 = vmatprep.subr.bf16.mxu0 0
    %404 = vmatpush1.bf16.msra.mxu0 %v386
    %405 = vmatprep.subr.bf16.mxu0 0
    %406 = vmatpush1.bf16.msra.mxu0 %v387
    %407 = vmatprep.subr.bf16.mxu0 0
    %408 = vmatpush1.bf16.msra.mxu0 %v388
    %409 = vmatprep.subr.bf16.mxu0 0
    %410 = vmatpush1.bf16.msra.mxu0 %v389
    %411 = vmatprep.subr.bf16.mxu0 0
    %412 = vmatpush1.bf16.msra.mxu0 %v390
    %413 = vmatprep.subr.bf16.mxu0 0
    %414 = vmatpush1.bf16.msra.mxu0 %v391
    %415 = vmatprep.subr.bf16.mxu0 0
    %416 = vmatpush1.bf16.msra.mxu0 %v392
    %417 = vmatprep.subr.bf16.mxu0 0
    %418 = vmatpush1.bf16.msra.mxu0 0
    %419 = vmatprep.subr.bf16.mxu0 0
    %420 = vmatpush1.bf16.msra.mxu0 0
    %421 = vmatprep.subr.bf16.mxu0 0
    %422 = vmatpush1.bf16.msra.mxu0 0
    %423 = vmatprep.subr.bf16.mxu0 0
    %424 = vmatpush1.bf16.msra.mxu0 0
    %425 = vmatprep.subr.bf16.mxu0 0
    %426 = vmatpush1.bf16.msra.mxu0 0
    %427 = vmatprep.subr.bf16.mxu0 0
    %428 = vmatpush1.bf16.msra.mxu0 0
    %429 = vmatprep.subr.bf16.mxu0 0
    %430 = vmatpush1.bf16.msra.mxu0 0
    %431 = vmatprep.subr.bf16.mxu0 0
    %432 = vmatpush1.bf16.msra.mxu0 0
    %433 = vmatprep.mubr.bf16.mxu0 0
    %434 = vmatmul.mubr.bf16.gmra.mrb[0].mxu0 %v332
    %v435 = vpop.f32.mrb[0].mxu0
    %v436 = vadd.f32 %v352, %v435
    %v437 = vpop.f32.mrb[0].mxu0
    %v438 = vpop.f32.mrb[0].mxu0
    %v439 = vpop.f32.mrb[0].mxu0
    %440 = vdwg.mxu0
    %v441 = vmax.f32 %v436, 0.0
    %v442 = vpack.c.bf16 %v441, %v441
    %v443 = vld [vmem:[#allocation9] sm:$0xf]
    %v444 = vld [vmem:[#allocation9 + $0x4] sm:$0xf]
    %v445 = vld [vmem:[#allocation9 + $0x8] sm:$0xf]
    %v446 = vld [vmem:[#allocation9 + $0xc] sm:$0xf]
    %v447 = vld [vmem:[#allocation9 + $0x10] sm:$0xf]
    %v448 = vld [vmem:[#allocation9 + $0x14] sm:$0xf]
    %v449 = vld [vmem:[#allocation9 + $0x18] sm:$0xf]
    %v450 = vld [vmem:[#allocation9 + $0x1c] sm:$0xf]
    %v451 = vld [vmem:[#allocation9 + $0x20] sm:$0xf]
    %v452 = vld [vmem:[#allocation9 + $0x24] sm:$0xf]
    %v453 = vld [vmem:[#allocation9 + $0x28] sm:$0xf]
    %v454 = vld [vmem:[#allocation9 + $0x2c] sm:$0xf]
    %v455 = vld [vmem:[#allocation9 + $0x30] sm:$0xf]
    %v456 = vld [vmem:[#allocation9 + $0x34] sm:$0xf]
    %v457 = vld [vmem:[#allocation9 + $0x38] sm:$0xf]
    %v458 = vld [vmem:[#allocation9 + $0x3c] sm:$0xf]
    %v459 = vlaneseq
    %v460 = vshrl.u32 %v459, 7
    %v461 = vsub.s32 2, %v460
    %v462 = vrot.slane %v80, %v461
    %v479 = vunpack.c.l.b16 %v443
    %v480 = vunpack.c.l.b16 %v444
    %v481 = vunpack.c.l.b16 %v445
    %v482 = vunpack.c.l.b16 %v446
    %v483 = vunpack.c.l.b16 %v447
    %v484 = vunpack.c.l.b16 %v448
    %v485 = vunpack.c.l.b16 %v449
    %v486 = vunpack.c.l.b16 %v450
    %v487 = vunpack.c.l.b16 %v451
    %v488 = vunpack.c.l.b16 %v452
    %v489 = vunpack.c.l.b16 %v453
    %v490 = vunpack.c.l.b16 %v454
    %v491 = vunpack.c.l.b16 %v455
    %v492 = vunpack.c.l.b16 %v456
    %v493 = vunpack.c.l.b16 %v457
    %v494 = vunpack.c.l.b16 %v458
    %v495 = vpack.c.b16 %v480, %v479
    %v496 = vpack.c.b16 %v482, %v481
    %v497 = vpack.c.b16 %v484, %v483
    %v498 = vpack.c.b16 %v486, %v485
    %v499 = vpack.c.b16 %v488, %v487
    %v500 = vpack.c.b16 %v490, %v489
    %v501 = vpack.c.b16 %v492, %v491
    %v502 = vpack.c.b16 %v494, %v493
    %511 = vmatprep.subr.bf16.mxu0 0
    %512 = vmatpush1.bf16.msra.mxu0 %v495
    %513 = vmatprep.subr.bf16.mxu0 0
    %514 = vmatpush1.bf16.msra.mxu0 %v496
    %515 = vmatprep.subr.bf16.mxu0 0
    %516 = vmatpush1.bf16.msra.mxu0 %v497
    %517 = vmatprep.subr.bf16.mxu0 0
    %518 = vmatpush1.bf16.msra.mxu0 %v498
    %519 = vmatprep.subr.bf16.mxu0 0
    %520 = vmatpush1.bf16.msra.mxu0 %v499
    %521 = vmatprep.subr.bf16.mxu0 0
    %522 = vmatpush1.bf16.msra.mxu0 %v500
    %523 = vmatprep.subr.bf16.mxu0 0
    %524 = vmatpush1.bf16.msra.mxu0 %v501
    %525 = vmatprep.subr.bf16.mxu0 0
    %526 = vmatpush1.bf16.msra.mxu0 %v502
    %527 = vmatprep.subr.bf16.mxu0 0
    %528 = vmatpush1.bf16.msra.mxu0 0
    %529 = vmatprep.subr.bf16.mxu0 0
    %530 = vmatpush1.bf16.msra.mxu0 0
    %531 = vmatprep.subr.bf16.mxu0 0
    %532 = vmatpush1.bf16.msra.mxu0 0
    %533 = vmatprep.subr.bf16.mxu0 0
    %534 = vmatpush1.bf16.msra.mxu0 0
    %535 = vmatprep.subr.bf16.mxu0 0
    %536 = vmatpush1.bf16.msra.mxu0 0
    %537 = vmatprep.subr.bf16.mxu0 0
    %538 = vmatpush1.bf16.msra.mxu0 0
    %539 = vmatprep.subr.bf16.mxu0 0
    %540 = vmatpush1.bf16.msra.mxu0 0
    %541 = vmatprep.subr.bf16.mxu0 0
    %542 = vmatpush1.bf16.msra.mxu0 0
    %543 = vmatprep.mubr.bf16.mxu0 0
    %544 = vmatmul.mubr.bf16.gmra.mrb[0].mxu0 %v442
    %v545 = vpop.f32.mrb[0].mxu0
    %v546 = vadd.f32 %v462, %v545
    %v547 = vpop.f32.mrb[0].mxu0
    %v548 = vpop.f32.mrb[0].mxu0
    %v549 = vpop.f32.mrb[0].mxu0
    %550 = vdwg.mxu0
    %v551 = vtanh.pop %v546
    %552 = vst [vmem:[#allocation11] sm:$0xff] %v551
    // Predicated region
    $region42: #{tpu_custom_call.1} parent=1 // pred_check
      _
    $region43: #{tpu_custom_call.1} parent=1 // pred_check_branch
      %554 = sbr.rel (0) target = $region45
    $region44: #{tpu_custom_call.1} parent=1 // pred_region
      %s556 = ssub.s32 128, 128
      %557 = vsyncadd [#allocation5], %s556
      %s559 = sshll.u32 [#allocation11], 4
      %s560 = int_to_ptr.vmem [resolvable:$true] %s559
      %562 = dma.vmem_to_hbm [thread:$0]  %s560, 128, %s6, [#allocation5]
    $region45: #{tpu_custom_call.1} parent=1 // pred_fallthru
      _
    // Predicated region
    $region46: #{tpu_custom_call.1} parent=1 // pred_check
      _
    $region47: #{tpu_custom_call.1} parent=1 // pred_check_branch
      %564 = sbr.rel (0) target = $region49
    $region48: #{tpu_custom_call.1} parent=1 // pred_region
      %565 = dma.done [#allocation5], 128
    $region49: #{tpu_custom_call.1} parent=1 // pred_fallthru
      _
    %566 = vsyncpa [#allocation4], 1
    %567 = vsyncpa [#allocation7], 1
    %568 = vsyncpa [#allocation10], 1
    %569 = vsyncpa [#allocation5], 1

// kernel: tpu_custom_call.1
$region0: #{tpu_custom_call.1}
  #allocation0 [shape = 'u32[]', space=smem, size = 0x4, offset = 0x4, fixed_abs, tag = 'smem constant byte address 0x4 - core index']
  #allocation1 [shape = 'u32[144,128]{1,0:T(1,128)}', space=vmem, size = 0x12000, scoped, tag = 'internal scratch']
  %s0 = inlined_call_operand.hbm [shape: bf16[8,16], index: 0, kind: input, shape index: {}]
  %s1 = inlined_call_operand.hbm [shape: bf16[16,128], index: 1, kind: input, shape index: {}]
  %s2 = inlined_call_operand.hbm [shape: bf16[128,128], index: 2, kind: input, shape index: {}]
  %s3 = inlined_call_operand.hbm [shape: bf16[128,128], index: 3, kind: input, shape index: {}]
  %s4 = inlined_call_operand.vmem [shape: f32[5,128], index: 4, kind: input, shape index: {}]
  %s5 = inlined_call_operand.hbm [shape: f32[8,128], index: 5, kind: output, shape index: {}]
  %s6 = sld [smem:[#allocation0]]
  $region46: #{tpu_custom_call.1} parent=0
    _
  %s8 = ssub.s32 1, %s6
  %s9 = scalar_select 0, %s8, %s6
  $region1: #{tpu_custom_call.1} parent=0
    #allocation2 [shape = 'u8[2048]{0}', space=vmem, size = 0x800, scoped, tag = 'input window, operand 0, single buffered']
    #allocation3 [shape = 's32[1]{0}', space=sflag, size = 0x4, scoped, tag = 'scoped memory for tpu_custom_call.1']
    #allocation4 [shape = 's32[1]{0}', space=sflag, size = 0x4, scoped, tag = 'scoped memory for tpu_custom_call.1']
    #allocation5 [shape = 'u8[4096]{0}', space=vmem, size = 0x1000, scoped, tag = 'input window, operand 1, single buffered']
    #allocation6 [shape = 's32[1]{0}', space=sflag, size = 0x4, scoped, tag = 'scoped memory for tpu_custom_call.1']
    #allocation7 [shape = 'u8[32768]{0}', space=vmem, size = 0x8000, scoped, tag = 'input window, operand 2, single buffered']
    #allocation8 [shape = 'u8[32768]{0}', space=vmem, size = 0x8000, scoped, tag = 'input window, operand 3, single buffered']
    #allocation9 [shape = 's32[1]{0}', space=sflag, size = 0x4, scoped, tag = 'scoped memory for tpu_custom_call.1']
    #allocation10 [shape = 'u8[4096]{0}', space=vmem, size = 0x1000, scoped, tag = 'output window, operand 0, single buffered']
    %10 = vsyncpa [#allocation3], 0
    %11 = vsyncpa [#allocation6], 0
    %12 = vsyncpa [#allocation9], 0
    %13 = vsyncpa [#allocation4], 0
    // Predicated region
    $region2: #{tpu_custom_call.1} parent=1 // pred_check
      _
    $region3: #{tpu_custom_call.1} parent=1 // pred_check_branch
      %15 = sbr.rel (0) target = $region5
    $region4: #{tpu_custom_call.1} parent=1 // pred_region
      %s17 = ssub.s32 64, 64
      %18 = vsyncadd [#allocation3], %s17
      %s20 = sshll.u32 [#allocation2], 4
      %s21 = int_to_ptr.vmem [resolvable:$true] %s20
      %23 = dma.hbm_to_vmem [thread:$0]  %s0, 64, %s21, [#allocation3]
    $region5: #{tpu_custom_call.1} parent=1 // pred_fallthru
      _
    // Predicated region
    $region6: #{tpu_custom_call.1} parent=1 // pred_check
      _
    $region7: #{tpu_custom_call.1} parent=1 // pred_check_branch
      %25 = sbr.rel (0) target = $region9
    $region8: #{tpu_custom_call.1} parent=1 // pred_region
      %s27 = ssub.s32 128, 128
      %28 = vsyncadd [#allocation6], %s27
      %s29 = sshll.u32 [#allocation5], 4
      %s30 = int_to_ptr.vmem [resolvable:$true] %s29
      %35 = dma.hbm_to_vmem [thread:$0]  %s1, 128, %s30, [#allocation6], 64, 64, 4
    $region9: #{tpu_custom_call.1} parent=1 // pred_fallthru
      _
    // Predicated region
    $region10: #{tpu_custom_call.1} parent=1 // pred_check
      _
    $region11: #{tpu_custom_call.1} parent=1 // pred_check_branch
      %37 = sbr.rel (0) target = $region13
    $region12: #{tpu_custom_call.1} parent=1 // pred_region
      %s39 = ssub.s32 1024, 1024
      %40 = vsyncadd [#allocation6], %s39
      %s41 = sshll.u32 [#allocation7], 4
      %s42 = int_to_ptr.vmem [resolvable:$true] %s41
      %47 = dma.hbm_to_vmem [thread:$0]  %s2, 1024, %s42, [#allocation6], 64, 64, 4
    $region13: #{tpu_custom_call.1} parent=1 // pred_fallthru
      _
    // Predicated region
    $region14: #{tpu_custom_call.1} parent=1 // pred_check
      _
    $region15: #{tpu_custom_call.1} parent=1 // pred_check_branch
      %49 = sbr.rel (0) target = $region17
    $region16: #{tpu_custom_call.1} parent=1 // pred_region
      %s51 = ssub.s32 1024, 1024
      %52 = vsyncadd [#allocation9], %s51
      %s53 = sshll.u32 [#allocation8], 4
      %s54 = int_to_ptr.vmem [resolvable:$true] %s53
      %59 = dma.hbm_to_vmem [thread:$0]  %s3, 1024, %s54, [#allocation9], 64, 64, 4
    $region17: #{tpu_custom_call.1} parent=1 // pred_fallthru
      _
    // Predicated region
    $region18: #{tpu_custom_call.1} parent=1 // pred_check
      _
    $region19: #{tpu_custom_call.1} parent=1 // pred_check_branch
      %61 = sbr.rel (0) target = $region21
    $region20: #{tpu_custom_call.1} parent=1 // pred_region
      _
    $region21: #{tpu_custom_call.1} parent=1 // pred_fallthru
      _
    // Predicated region
    $region22: #{tpu_custom_call.1} parent=1 // pred_check
      _
    $region23: #{tpu_custom_call.1} parent=1 // pred_check_branch
      %63 = sbr.rel (0) target = $region25
    $region24: #{tpu_custom_call.1} parent=1 // pred_region
      %64 = dma.done [#allocation3], 64
    $region25: #{tpu_custom_call.1} parent=1 // pred_fallthru
      _
    // Predicated region
    $region26: #{tpu_custom_call.1} parent=1 // pred_check
      _
    $region27: #{tpu_custom_call.1} parent=1 // pred_check_branch
      %66 = sbr.rel (0) target = $region29
    $region28: #{tpu_custom_call.1} parent=1 // pred_region
      %67 = dma.done [#allocation6], 128
    $region29: #{tpu_custom_call.1} parent=1 // pred_fallthru
      _
    // Predicated region
    $region30: #{tpu_custom_call.1} parent=1 // pred_check
      _
    $region31: #{tpu_custom_call.1} parent=1 // pred_check_branch
      %69 = sbr.rel (0) target = $region33
    $region32: #{tpu_custom_call.1} parent=1 // pred_region
      %70 = dma.done [#allocation6], 1024
    $region33: #{tpu_custom_call.1} parent=1 // pred_fallthru
      _
    // Predicated region
    $region34: #{tpu_custom_call.1} parent=1 // pred_check
      _
    $region35: #{tpu_custom_call.1} parent=1 // pred_check_branch
      %72 = sbr.rel (0) target = $region37
    $region36: #{tpu_custom_call.1} parent=1 // pred_region
      %73 = dma.done [#allocation9], 1024
    $region37: #{tpu_custom_call.1} parent=1 // pred_fallthru
      _
    %v75 = vld [vmem:[#allocation2] sm:$0xf]
    %v76 = vld [vmem:[%s4] sm:$0x1f]
    %v77 = vld [vmem:[#allocation5] sm:$0xf]
    %v78 = vld [vmem:[#allocation5 + $0x4] sm:$0xf]
    %v79 = vlaneseq
    %v80 = vshrl.u32 %v79, 7
    %v81 = vsub.s32 0, %v80
    %v82 = vrot.slane %v76, %v81
    %v85 = vunpack.c.l.b16 %v77
    %v86 = vunpack.c.l.b16 %v78
    %v87 = vpack.c.b16 %v86, %v85
    %vm89 = vcmask 130048
    %v91 = vsel %vm89, %v75, 0
    %93 = vmatprep.subr.bf16.mxu0 0
    %94 = vmatpush1.bf16.msra.mxu0 %v87
    %95 = vmatprep.subr.bf16.mxu0 0
    %96 = vmatpush1.bf16.msra.mxu0 0
    %97 = vmatprep.subr.bf16.mxu0 0
    %98 = vmatpush1.bf16.msra.mxu0 0
    %99 = vmatprep.subr.bf16.mxu0 0
    %100 = vmatpush1.bf16.msra.mxu0 0
    %101 = vmatprep.subr.bf16.mxu0 0
    %102 = vmatpush1.bf16.msra.mxu0 0
    %103 = vmatprep.subr.bf16.mxu0 0
    %104 = vmatpush1.bf16.msra.mxu0 0
    %105 = vmatprep.subr.bf16.mxu0 0
    %106 = vmatpush1.bf16.msra.mxu0 0
    %107 = vmatprep.subr.bf16.mxu0 0
    %108 = vmatpush1.bf16.msra.mxu0 0
    %109 = vmatprep.subr.bf16.mxu0 0
    %110 = vmatpush1.bf16.msra.mxu0 0
    %111 = vmatprep.subr.bf16.mxu0 0
    %112 = vmatpush1.bf16.msra.mxu0 0
    %113 = vmatprep.subr.bf16.mxu0 0
    %114 = vmatpush1.bf16.msra.mxu0 0
    %115 = vmatprep.subr.bf16.mxu0 0
    %116 = vmatpush1.bf16.msra.mxu0 0
    %117 = vmatprep.subr.bf16.mxu0 0
    %118 = vmatpush1.bf16.msra.mxu0 0
    %119 = vmatprep.subr.bf16.mxu0 0
    %120 = vmatpush1.bf16.msra.mxu0 0
    %121 = vmatprep.subr.bf16.mxu0 0
    %122 = vmatpush1.bf16.msra.mxu0 0
    %123 = vmatprep.subr.bf16.mxu0 0
    %124 = vmatpush1.bf16.msra.mxu0 0
    %125 = vmatprep.mubr.bf16.mxu0 0
    %126 = vmatmul.mubr.bf16.gmra.mrb[0].mxu0 %v91
    %v127 = vpop.f32.mrb[0].mxu0
    %v128 = vadd.f32 %v82, %v127
    %v129 = vpop.f32.mrb[0].mxu0
    %v130 = vpop.f32.mrb[0].mxu0
    %v131 = vpop.f32.mrb[0].mxu0
    %132 = vdwg.mxu0
    %v133 = vmax.f32 %v128, 0.0
    %v134 = vpack.c.bf16 %v133, %v133
    %v135 = vld [vmem:[#allocation7] sm:$0xf]
    %v136 = vld [vmem:[#allocation7 + $0x4] sm:$0xf]
    %v137 = vld [vmem:[#allocation7 + $0x8] sm:$0xf]
    %v138 = vld [vmem:[#allocation7 + $0xc] sm:$0xf]
    %v139 = vld [vmem:[#allocation7 + $0x10] sm:$0xf]
    %v140 = vld [vmem:[#allocation7 + $0x14] sm:$0xf]
    %v141 = vld [vmem:[#allocation7 + $0x18] sm:$0xf]
    %v142 = vld [vmem:[#allocation7 + $0x1c] sm:$0xf]
    %v143 = vld [vmem:[#allocation7 + $0x20] sm:$0xf]
    %v144 = vld [vmem:[#allocation7 + $0x24] sm:$0xf]
    %v145 = vld [vmem:[#allocation7 + $0x28] sm:$0xf]
    %v146 = vld [vmem:[#allocation7 + $0x2c] sm:$0xf]
    %v147 = vld [vmem:[#allocation7 + $0x30] sm:$0xf]
    %v148 = vld [vmem:[#allocation7 + $0x34] sm:$0xf]
    %v149 = vld [vmem:[#allocation7 + $0x38] sm:$0xf]
    %v150 = vld [vmem:[#allocation7 + $0x3c] sm:$0xf]
    %v151 = vlaneseq
    %v152 = vshrl.u32 %v151, 7
    %v153 = vsub.s32 1, %v152
    %v154 = vrot.slane %v76, %v153
    %v171 = vunpack.c.l.b16 %v135
    %v172 = vunpack.c.l.b16 %v136
    %v173 = vunpack.c.l.b16 %v137
    %v174 = vunpack.c.l.b16 %v138
    %v175 = vunpack.c.l.b16 %v139
    %v176 = vunpack.c.l.b16 %v140
    %v177 = vunpack.c.l.b16 %v141
    %v178 = vunpack.c.l.b16 %v142
    %v179 = vunpack.c.l.b16 %v143
    %v180 = vunpack.c.l.b16 %v144
    %v181 = vunpack.c.l.b16 %v145
    %v182 = vunpack.c.l.b16 %v146
    %v183 = vunpack.c.l.b16 %v147
    %v184 = vunpack.c.l.b16 %v148
    %v185 = vunpack.c.l.b16 %v149
    %v186 = vunpack.c.l.b16 %v150
    %v187 = vpack.c.b16 %v172, %v171
    %v188 = vpack.c.b16 %v174, %v173
    %v189 = vpack.c.b16 %v176, %v175
    %v190 = vpack.c.b16 %v178, %v177
    %v191 = vpack.c.b16 %v180, %v179
    %v192 = vpack.c.b16 %v182, %v181
    %v193 = vpack.c.b16 %v184, %v183
    %v194 = vpack.c.b16 %v186, %v185
    %203 = vmatprep.subr.bf16.mxu0 0
    %204 = vmatpush1.bf16.msra.mxu0 %v187
    %205 = vmatprep.subr.bf16.mxu0 0
    %206 = vmatpush1.bf16.msra.mxu0 %v188
    %207 = vmatprep.subr.bf16.mxu0 0
    %208 = vmatpush1.bf16.msra.mxu0 %v189
    %209 = vmatprep.subr.bf16.mxu0 0
    %210 = vmatpush1.bf16.msra.mxu0 %v190
    %211 = vmatprep.subr.bf16.mxu0 0
    %212 = vmatpush1.bf16.msra.mxu0 %v191
    %213 = vmatprep.subr.bf16.mxu0 0
    %214 = vmatpush1.bf16.msra.mxu0 %v192
    %215 = vmatprep.subr.bf16.mxu0 0
    %216 = vmatpush1.bf16.msra.mxu0 %v193
    %217 = vmatprep.subr.bf16.mxu0 0
    %218 = vmatpush1.bf16.msra.mxu0 %v194
    %219 = vmatprep.subr.bf16.mxu0 0
    %220 = vmatpush1.bf16.msra.mxu0 0
    %221 = vmatprep.subr.bf16.mxu0 0
    %222 = vmatpush1.bf16.msra.mxu0 0
    %223 = vmatprep.subr.bf16.mxu0 0
    %224 = vmatpush1.bf16.msra.mxu0 0
    %225 = vmatprep.subr.bf16.mxu0 0
    %226 = vmatpush1.bf16.msra.mxu0 0
    %227 = vmatprep.subr.bf16.mxu0 0
    %228 = vmatpush1.bf16.msra.mxu0 0
    %229 = vmatprep.subr.bf16.mxu0 0
    %230 = vmatpush1.bf16.msra.mxu0 0
    %231 = vmatprep.subr.bf16.mxu0 0
    %232 = vmatpush1.bf16.msra.mxu0 0
    %233 = vmatprep.subr.bf16.mxu0 0
    %234 = vmatpush1.bf16.msra.mxu0 0
    %235 = vmatprep.mubr.bf16.mxu0 0
    %236 = vmatmul.mubr.bf16.gmra.mrb[0].mxu0 %v134
    %v237 = vpop.f32.mrb[0].mxu0
    %v238 = vadd.f32 %v154, %v237
    %v239 = vpop.f32.mrb[0].mxu0
    %v240 = vpop.f32.mrb[0].mxu0
    %v241 = vpop.f32.mrb[0].mxu0
    %242 = vdwg.mxu0
    %v243 = vmax.f32 %v238, 0.0
    %v244 = vpack.c.bf16 %v243, %v243
    %v245 = vld [vmem:[#allocation8] sm:$0xf]
    %v246 = vld [vmem:[#allocation8 + $0x4] sm:$0xf]
    %v247 = vld [vmem:[#allocation8 + $0x8] sm:$0xf]
    %v248 = vld [vmem:[#allocation8 + $0xc] sm:$0xf]
    %v249 = vld [vmem:[#allocation8 + $0x10] sm:$0xf]
    %v250 = vld [vmem:[#allocation8 + $0x14] sm:$0xf]
    %v251 = vld [vmem:[#allocation8 + $0x18] sm:$0xf]
    %v252 = vld [vmem:[#allocation8 + $0x1c] sm:$0xf]
    %v253 = vld [vmem:[#allocation8 + $0x20] sm:$0xf]
    %v254 = vld [vmem:[#allocation8 + $0x24] sm:$0xf]
    %v255 = vld [vmem:[#allocation8 + $0x28] sm:$0xf]
    %v256 = vld [vmem:[#allocation8 + $0x2c] sm:$0xf]
    %v257 = vld [vmem:[#allocation8 + $0x30] sm:$0xf]
    %v258 = vld [vmem:[#allocation8 + $0x34] sm:$0xf]
    %v259 = vld [vmem:[#allocation8 + $0x38] sm:$0xf]
    %v260 = vld [vmem:[#allocation8 + $0x3c] sm:$0xf]
    %v261 = vlaneseq
    %v262 = vshrl.u32 %v261, 7
    %v263 = vsub.s32 2, %v262
    %v264 = vrot.slane %v76, %v263
    %v281 = vunpack.c.l.b16 %v245
    %v282 = vunpack.c.l.b16 %v246
    %v283 = vunpack.c.l.b16 %v247
    %v284 = vunpack.c.l.b16 %v248
    %v285 = vunpack.c.l.b16 %v249
    %v286 = vunpack.c.l.b16 %v250
    %v287 = vunpack.c.l.b16 %v251
    %v288 = vunpack.c.l.b16 %v252
    %v289 = vunpack.c.l.b16 %v253
    %v290 = vunpack.c.l.b16 %v254
    %v291 = vunpack.c.l.b16 %v255
    %v292 = vunpack.c.l.b16 %v256
    %v293 = vunpack.c.l.b16 %v257
    %v294 = vunpack.c.l.b16 %v258
    %v295 = vunpack.c.l.b16 %v259
    %v296 = vunpack.c.l.b16 %v260
    %v297 = vpack.c.b16 %v282, %v281
    %v298 = vpack.c.b16 %v284, %v283
    %v299 = vpack.c.b16 %v286, %v285
    %v300 = vpack.c.b16 %v288, %v287
    %v301 = vpack.c.b16 %v290, %v289
    %v302 = vpack.c.b16 %v292, %v291
    %v303 = vpack.c.b16 %v294, %v293
    %v304 = vpack.c.b16 %v296, %v295
    %313 = vmatprep.subr.bf16.mxu0 0
    %314 = vmatpush1.bf16.msra.mxu0 %v297
    %315 = vmatprep.subr.bf16.mxu0 0
    %316 = vmatpush1.bf16.msra.mxu0 %v298
    %317 = vmatprep.subr.bf16.mxu0 0
    %318 = vmatpush1.bf16.msra.mxu0 %v299
    %319 = vmatprep.subr.bf16.mxu0 0
    %320 = vmatpush1.bf16.msra.mxu0 %v300
    %321 = vmatprep.subr.bf16.mxu0 0
    %322 = vmatpush1.bf16.msra.mxu0 %v301
    %323 = vmatprep.subr.bf16.mxu0 0
    %324 = vmatpush1.bf16.msra.mxu0 %v302
    %325 = vmatprep.subr.bf16.mxu0 0
    %326 = vmatpush1.bf16.msra.mxu0 %v303
    %327 = vmatprep.subr.bf16.mxu0 0
    %328 = vmatpush1.bf16.msra.mxu0 %v304
    %329 = vmatprep.subr.bf16.mxu0 0
    %330 = vmatpush1.bf16.msra.mxu0 0
    %331 = vmatprep.subr.bf16.mxu0 0
    %332 = vmatpush1.bf16.msra.mxu0 0
    %333 = vmatprep.subr.bf16.mxu0 0
    %334 = vmatpush1.bf16.msra.mxu0 0
    %335 = vmatprep.subr.bf16.mxu0 0
    %336 = vmatpush1.bf16.msra.mxu0 0
    %337 = vmatprep.subr.bf16.mxu0 0
    %338 = vmatpush1.bf16.msra.mxu0 0
    %339 = vmatprep.subr.bf16.mxu0 0
    %340 = vmatpush1.bf16.msra.mxu0 0
    %341 = vmatprep.subr.bf16.mxu0 0
    %342 = vmatpush1.bf16.msra.mxu0 0
    %343 = vmatprep.subr.bf16.mxu0 0
    %344 = vmatpush1.bf16.msra.mxu0 0
    %345 = vmatprep.mubr.bf16.mxu0 0
    %346 = vmatmul.mubr.bf16.gmra.mrb[0].mxu0 %v244
    %v347 = vpop.f32.mrb[0].mxu0
    %v348 = vadd.f32 %v264, %v347
    %v349 = vpop.f32.mrb[0].mxu0
    %v350 = vpop.f32.mrb[0].mxu0
    %v351 = vpop.f32.mrb[0].mxu0
    %352 = vdwg.mxu0
    %v353 = vtanh.pop %v348
    %354 = vst [vmem:[#allocation10] sm:$0xff] %v353
    // Predicated region
    $region38: #{tpu_custom_call.1} parent=1 // pred_check
      _
    $region39: #{tpu_custom_call.1} parent=1 // pred_check_branch
      %356 = sbr.rel (0) target = $region41
    $region40: #{tpu_custom_call.1} parent=1 // pred_region
      %s358 = ssub.s32 128, 128
      %359 = vsyncadd [#allocation4], %s358
      %s361 = sshll.u32 [#allocation10], 4
      %s362 = int_to_ptr.vmem [resolvable:$true] %s361
      %364 = dma.vmem_to_hbm [thread:$0]  %s362, 128, %s5, [#allocation4]
    $region41: #{tpu_custom_call.1} parent=1 // pred_fallthru
      _
    // Predicated region
    $region42: #{tpu_custom_call.1} parent=1 // pred_check
      _
    $region43: #{tpu_custom_call.1} parent=1 // pred_check_branch
      %366 = sbr.rel (0) target = $region45
    $region44: #{tpu_custom_call.1} parent=1 // pred_region
      %367 = dma.done [#allocation4], 128
    $region45: #{tpu_custom_call.1} parent=1 // pred_fallthru
      _
    %368 = vsyncpa [#allocation3], 1
    %369 = vsyncpa [#allocation6], 1
    %370 = vsyncpa [#allocation9], 1
    %371 = vsyncpa [#allocation4], 1

</llo_original>
